<compile_context>
chip_gen: v7x
topology: tpu7x:2x2x1
jax: 0.10.0
libtpu: 0.0.40
codegen_flags: <defaults>
</compile_context>

<pallas_src>
import math

import jax
import jax.numpy as jnp
from jax.experimental import pallas as pl
from jax.experimental.pallas import tpu as pltpu


# ----------------------------------------------------------------------------
# Kernel
# ----------------------------------------------------------------------------
def _make_lstm_kernel(num_layers, hidden_size, seq_len, batch_pad):
    """Builds a Pallas kernel closing over static structure (L, H, T, B_pad)."""
    H = hidden_size
    T = seq_len
    B = batch_pad

    def kernel(*refs):
        # refs layout:
        #   refs[0]             : x        (T, B, I)        time-major, batch-padded
        #   refs[1+3l+0]        : w_ih_T_l (I_l, 4H)        gate order [i,f,o,g]
        #   refs[1+3l+1]        : w_hh_T_l (H,   4H)        gate order [i,f,o,g]
        #   refs[1+3l+2]        : bias_l   (1,   4H)        (b_ih+b_hh), reordered
        #   refs[1+3L]          : w_fc_T   (H, O)
        #   refs[2+3L]          : b_fc     (1, O)
        #   refs[3+3L]          : out      (B, O)
        #   refs[4+3L]          : seq_ref  (T, B, H)        VMEM scratch
        x_ref = refs[0]
        layer_refs = refs[1:1 + 3 * num_layers]
        wfc_ref = refs[1 + 3 * num_layers]
        bfc_ref = refs[2 + 3 * num_layers]
        out_ref = refs[3 + 3 * num_layers]
        seq_ref = refs[4 + 3 * num_layers]

        h = None
        for l in range(num_layers):
            w_ih_T = layer_refs[3 * l + 0][...]            # (I_l, 4H)
            w_hh_T = layer_refs[3 * l + 1][...]            # (H,   4H)
            bias = layer_refs[3 * l + 2][...]              # (1,   4H)

            if l == 0:
                inp = x_ref[...].astype(jnp.float32)       # (T, B, I)
            else:
                inp = seq_ref[...]                         # (T, B, H)
            in_l = inp.shape[-1]

            # Hoisted, bias-folded input projection: one MXU matmul per layer.
            gates_x = (
                jnp.dot(inp.reshape(T * B, in_l), w_ih_T,
                        preferred_element_type=jnp.float32)
                + bias
            ).reshape(T, B, 4 * H)                         # (T, B, 4H)

            h = jnp.zeros((B, H), jnp.float32)
            c = jnp.zeros((B, H), jnp.float32)
            is_last_layer = (l == num_layers - 1)

            for t in range(T):
                gates = gates_x[t] + jnp.dot(
                    h, w_hh_T, preferred_element_type=jnp.float32)  # (B, 4H)
                # gate order [i, f, o, g]: one sigmoid over 3H, one tanh over H
                sig = jax.nn.sigmoid(gates[:, :3 * H])
                i_g = sig[:, 0 * H:1 * H]
                f_g = sig[:, 1 * H:2 * H]
                o_g = sig[:, 2 * H:3 * H]
                g_g = jnp.tanh(gates[:, 3 * H:4 * H])
                c = f_g * c + i_g * g_g
                h = o_g * jnp.tanh(c)
                if not is_last_layer:
                    seq_ref[t] = h                         # feed next layer

        # h == out[:, -1, :] of the top LSTM layer
        y = jnp.dot(h, wfc_ref[...], preferred_element_type=jnp.float32) + bfc_ref[...]
        out_ref[...] = y.astype(out_ref.dtype)

    return kernel


# ----------------------------------------------------------------------------
# One-time parameter preparation (transposes, bias fold, gate reordering)
# ----------------------------------------------------------------------------
def _reorder_gates(w):
    """Reorder PyTorch gate blocks [i, f, g, o] -> [i, f, o, g] along axis 0."""
    i, f, g, o = jnp.split(w, 4, axis=0)
    return jnp.concatenate([i, f, o, g], axis=0)


def prepare_params(params):
    """Pre-transpose / permute weights once so the per-call wrapper is trivial."""
    layer_flat = []
    for (w_ih, w_hh, b_ih, b_hh) in params["layers"]:
        layer_flat.append(jnp.transpose(_reorder_gates(w_ih)))          # (I_l, 4H)
        layer_flat.append(jnp.transpose(_reorder_gates(w_hh)))          # (H,   4H)
        layer_flat.append(_reorder_gates(b_ih + b_hh).reshape(1, -1))   # (1,   4H)
    fc_w_T = jnp.transpose(params["fc_w"])                              # (H, O)
    fc_b = params["fc_b"].reshape(1, -1)                                # (1, O)
    return {"layer_flat": layer_flat, "fc_w_T": fc_w_T, "fc_b": fc_b}


# ----------------------------------------------------------------------------
# Wrapper
# ----------------------------------------------------------------------------
def lstm_forecast_pallas(x, prepped, *, hidden_size, num_layers, output_size):
    """Runs the full LSTM forward + final Linear inside one Pallas kernel."""
    B, T, _ = x.shape
    B_pad = max(8, ((B + 7) // 8) * 8)     # full sublane occupancy

    # time-major + batch pad so the hoisted projection is one (T*B, I) matmul
    x_tb = jnp.transpose(x, (1, 0, 2)).astype(jnp.float32)   # (T, B, I)
    if B_pad != B:
        x_tb = jnp.pad(x_tb, ((0, 0), (0, B_pad - B), (0, 0)))

    flat_inputs = [x_tb] + list(prepped["layer_flat"]) + [prepped["fc_w_T"],
                                                          prepped["fc_b"]]

    kernel = _make_lstm_kernel(num_layers, hidden_size, T, B_pad)

    out = pl.pallas_call(
        kernel,
        out_shape=jax.ShapeDtypeStruct((B_pad, output_size), jnp.float32),
        in_specs=[pl.BlockSpec(memory_space=pltpu.MemorySpace.VMEM)]
        * len(flat_inputs),
        out_specs=pl.BlockSpec(memory_space=pltpu.MemorySpace.VMEM),
        scratch_shapes=[pltpu.VMEM((T, B_pad, hidden_size), jnp.float32)],
    )(*flat_inputs)
    # TODO(synk): for production shapes (large B/T/H) add a batch grid with
    # dimension_semantics=("parallel",) instead of full-array VMEM residency.
    return out[:B]


# ----------------------------------------------------------------------------
# Pure-JAX reference (PyTorch nn.LSTM + Linear semantics, original gate order)
# ----------------------------------------------------------------------------
def lstm_forecast_ref(x, params, *, hidden_size, num_layers):
    B, T, _ = x.shape
    H = hidden_size
    layer_in = x.astype(jnp.float32)
    for l in range(num_layers):
        w_ih, w_hh, b_ih, b_hh = params["layers"][l]
        h = jnp.zeros((B, H), jnp.float32)
        c = jnp.zeros((B, H), jnp.float32)
        outs = []
        for t in range(T):
            gates = layer_in[:, t, :] @ w_ih.T + h @ w_hh.T + b_ih + b_hh
            i_g = jax.nn.sigmoid(gates[:, 0 * H:1 * H])
            f_g = jax.nn.sigmoid(gates[:, 1 * H:2 * H])
            g_g = jnp.tanh(gates[:, 2 * H:3 * H])
            o_g = jax.nn.sigmoid(gates[:, 3 * H:4 * H])
            c = f_g * c + i_g * g_g
            h = o_g * jnp.tanh(c)
            outs.append(h)
        layer_in = jnp.stack(outs, axis=1)
    return layer_in[:, -1, :] @ params["fc_w"].T + params["fc_b"]


def init_params(key, input_size, hidden_size, num_layers, output_size):
    """Deterministic init mirroring PyTorch's uniform(-1/sqrt(H), 1/sqrt(H))."""
    k = 1.0 / math.sqrt(hidden_size)
    layers = []
    for l in range(num_layers):
        in_l = input_size if l == 0 else hidden_size
        key, k1, k2, k3, k4 = jax.random.split(key, 5)
        w_ih = jax.random.uniform(k1, (4 * hidden_size, in_l), jnp.float32, -k, k)
        w_hh = jax.random.uniform(k2, (4 * hidden_size, hidden_size), jnp.float32, -k, k)
        b_ih = jax.random.uniform(k3, (4 * hidden_size,), jnp.float32, -k, k)
        b_hh = jax.random.uniform(k4, (4 * hidden_size,), jnp.float32, -k, k)
        layers.append((w_ih, w_hh, b_ih, b_hh))
    key, k5, k6 = jax.random.split(key, 3)
    fc_w = jax.random.uniform(k5, (output_size, hidden_size), jnp.float32, -k, k)
    fc_b = jax.random.uniform(k6, (output_size,), jnp.float32, -k, k)
    return {"layers": layers, "fc_w": fc_w, "fc_b": fc_b}


if __name__ == "__main__":
    # LSTMForecast(input_size=4, hidden_size=32, num_layers=2, output_size=1),
    # batch=2, seq=8.  dropout_prob=0.0 -> no-op in forward.
    INPUT_SIZE, HIDDEN_SIZE, NUM_LAYERS, OUTPUT_SIZE = 4, 32, 2, 1
    BATCH, SEQ = 2, 8

    root = jax.random.PRNGKey(0)
    kx, kp = jax.random.split(root)
    x = jax.random.normal(kx, (BATCH, SEQ, INPUT_SIZE), dtype=jnp.float32)
    params = init_params(kp, INPUT_SIZE, HIDDEN_SIZE, NUM_LAYERS, OUTPUT_SIZE)

    # One-time parameter prep (transposes / gate permutation / bias fold).
    prepped = prepare_params(params)

    out = lstm_forecast_pallas(
        x, prepped,
        hidden_size=HIDDEN_SIZE, num_layers=NUM_LAYERS, output_size=OUTPUT_SIZE,
    )
    out = jax.block_until_ready(out)

    ref = lstm_forecast_ref(x, params, hidden_size=HIDDEN_SIZE, num_layers=NUM_LAYERS)
    assert out.shape == (BATCH, OUTPUT_SIZE)
    assert jnp.allclose(out, ref, atol=1e-5, rtol=1e-5), (out, ref)

    print("KERNEL_OK")
</pallas_src>

<mosaic_0001>
module attributes {stable_mosaic.version = 11 : i64} {
  func.func @kernel(%arg0: memref<8x8x4xf32, #tpu.memory_space<vmem>>, %arg1: memref<4x128xf32, #tpu.memory_space<vmem>>, %arg2: memref<32x128xf32, #tpu.memory_space<vmem>>, %arg3: memref<1x128xf32, #tpu.memory_space<vmem>>, %arg4: memref<32x128xf32, #tpu.memory_space<vmem>>, %arg5: memref<32x128xf32, #tpu.memory_space<vmem>>, %arg6: memref<1x128xf32, #tpu.memory_space<vmem>>, %arg7: memref<32x1xf32, #tpu.memory_space<vmem>>, %arg8: memref<1x1xf32, #tpu.memory_space<vmem>>, %arg9: memref<8x1xf32, #tpu.memory_space<vmem>>, %arg10: memref<8x8x32xf32, #tpu.memory_space<vmem>>) attributes {dimension_semantics = [], scalar_prefetch = 0 : i64, scratch_operands = 1 : i64, tpu.core_type = #tpu.core_type<tc>} {
    %c0 = arith.constant 0 : index
    %c0_0 = arith.constant 0 : index
    %0 = vector.load %arg1[%c0, %c0_0] : memref<4x128xf32, #tpu.memory_space<vmem>>, vector<4x128xf32>
    %c0_1 = arith.constant 0 : index
    %c0_2 = arith.constant 0 : index
    %1 = vector.load %arg2[%c0_1, %c0_2] : memref<32x128xf32, #tpu.memory_space<vmem>>, vector<32x128xf32>
    %c0_3 = arith.constant 0 : index
    %c0_4 = arith.constant 0 : index
    %2 = vector.load %arg3[%c0_3, %c0_4] : memref<1x128xf32, #tpu.memory_space<vmem>>, vector<1x128xf32>
    %c0_5 = arith.constant 0 : index
    %c0_6 = arith.constant 0 : index
    %c0_7 = arith.constant 0 : index
    %3 = vector.load %arg0[%c0_5, %c0_6, %c0_7] : memref<8x8x4xf32, #tpu.memory_space<vmem>>, vector<8x8x4xf32>
    %4 = vector.shape_cast %3 : vector<8x8x4xf32> to vector<64x4xf32>
    %cst = arith.constant dense<0.000000e+00> : vector<64x128xf32>
    %5 = tpu.matmul %4, %0, %cst {dimension_numbers = #tpu.dot_dimension_numbers<[1], [0], [0], [1], [0, 0, 1, 1], [], []>} : vector<64x4xf32>, vector<4x128xf32>, vector<64x128xf32> -> vector<64x128xf32>
    %6 = vector.broadcast %2 : vector<1x128xf32> to vector<64x128xf32>
    %7 = arith.addf %5, %6 : vector<64x128xf32>
    %8 = vector.shape_cast %7 : vector<64x128xf32> to vector<8x8x128xf32>
    %cst_8 = arith.constant 0.000000e+00 : f32
    %9 = vector.broadcast %cst_8 : f32 to vector<8x32xf32>
    %cst_9 = arith.constant 0.000000e+00 : f32
    %10 = vector.broadcast %cst_9 : f32 to vector<8x32xf32>
    %11 = vector.extract_strided_slice %8 {offsets = [0, 0, 0], sizes = [1, 8, 128], strides = [1, 1, 1]} : vector<8x8x128xf32> to vector<1x8x128xf32>
    %12 = vector.shape_cast %11 : vector<1x8x128xf32> to vector<8x128xf32>
    %cst_10 = arith.constant dense<0.000000e+00> : vector<8x128xf32>
    %13 = tpu.matmul %9, %1, %cst_10 {dimension_numbers = #tpu.dot_dimension_numbers<[1], [0], [0], [1], [0, 0, 1, 1], [], []>} : vector<8x32xf32>, vector<32x128xf32>, vector<8x128xf32> -> vector<8x128xf32>
    %14 = arith.addf %12, %13 : vector<8x128xf32>
    %15 = vector.extract_strided_slice %14 {offsets = [0, 0], sizes = [8, 96], strides = [1, 1]} : vector<8x128xf32> to vector<8x96xf32>
    %16 = arith.negf %15 : vector<8x96xf32>
    %17 = math.exp %16 : vector<8x96xf32>
    %cst_11 = arith.constant 1.000000e+00 : f32
    %18 = vector.broadcast %cst_11 : f32 to vector<8x96xf32>
    %19 = arith.addf %18, %17 : vector<8x96xf32>
    %20 = arith.divf %18, %19 : vector<8x96xf32>
    %21 = vector.extract_strided_slice %20 {offsets = [0, 0], sizes = [8, 32], strides = [1, 1]} : vector<8x96xf32> to vector<8x32xf32>
    %22 = vector.extract_strided_slice %20 {offsets = [0, 32], sizes = [8, 32], strides = [1, 1]} : vector<8x96xf32> to vector<8x32xf32>
    %23 = vector.extract_strided_slice %20 {offsets = [0, 64], sizes = [8, 32], strides = [1, 1]} : vector<8x96xf32> to vector<8x32xf32>
    %24 = vector.extract_strided_slice %14 {offsets = [0, 96], sizes = [8, 32], strides = [1, 1]} : vector<8x128xf32> to vector<8x32xf32>
    %25 = math.tanh %24 : vector<8x32xf32>
    %26 = arith.mulf %22, %10 : vector<8x32xf32>
    %27 = arith.mulf %21, %25 : vector<8x32xf32>
    %28 = arith.addf %26, %27 : vector<8x32xf32>
    %29 = math.tanh %28 : vector<8x32xf32>
    %30 = arith.mulf %23, %29 : vector<8x32xf32>
    %c0_12 = arith.constant 0 : index
    %c0_13 = arith.constant 0 : index
    %c0_14 = arith.constant 0 : index
    %31 = vector.load %arg10[%c0_12, %c0_13, %c0_14] : memref<8x8x32xf32, #tpu.memory_space<vmem>>, vector<1x8x32xf32>
    %32 = vector.shape_cast %31 : vector<1x8x32xf32> to vector<8x32xf32>
    %33 = vector.shape_cast %30 : vector<8x32xf32> to vector<1x8x32xf32>
    tpu.vector_store %arg10[%c0_12, %c0_13, %c0_14], %33 {strides = array<i32>} : memref<8x8x32xf32, #tpu.memory_space<vmem>>, vector<1x8x32xf32>,
    %34 = vector.extract_strided_slice %8 {offsets = [1, 0, 0], sizes = [1, 8, 128], strides = [1, 1, 1]} : vector<8x8x128xf32> to vector<1x8x128xf32>
    %35 = vector.shape_cast %34 : vector<1x8x128xf32> to vector<8x128xf32>
    %cst_15 = arith.constant dense<0.000000e+00> : vector<8x128xf32>
    %36 = tpu.matmul %30, %1, %cst_15 {dimension_numbers = #tpu.dot_dimension_numbers<[1], [0], [0], [1], [0, 0, 1, 1], [], []>} : vector<8x32xf32>, vector<32x128xf32>, vector<8x128xf32> -> vector<8x128xf32>
    %37 = arith.addf %35, %36 : vector<8x128xf32>
    %38 = vector.extract_strided_slice %37 {offsets = [0, 0], sizes = [8, 96], strides = [1, 1]} : vector<8x128xf32> to vector<8x96xf32>
    %39 = arith.negf %38 : vector<8x96xf32>
    %40 = math.exp %39 : vector<8x96xf32>
    %cst_16 = arith.constant 1.000000e+00 : f32
    %41 = vector.broadcast %cst_16 : f32 to vector<8x96xf32>
    %42 = arith.addf %41, %40 : vector<8x96xf32>
    %43 = arith.divf %41, %42 : vector<8x96xf32>
    %44 = vector.extract_strided_slice %43 {offsets = [0, 0], sizes = [8, 32], strides = [1, 1]} : vector<8x96xf32> to vector<8x32xf32>
    %45 = vector.extract_strided_slice %43 {offsets = [0, 32], sizes = [8, 32], strides = [1, 1]} : vector<8x96xf32> to vector<8x32xf32>
    %46 = vector.extract_strided_slice %43 {offsets = [0, 64], sizes = [8, 32], strides = [1, 1]} : vector<8x96xf32> to vector<8x32xf32>
    %47 = vector.extract_strided_slice %37 {offsets = [0, 96], sizes = [8, 32], strides = [1, 1]} : vector<8x128xf32> to vector<8x32xf32>
    %48 = math.tanh %47 : vector<8x32xf32>
    %49 = arith.mulf %45, %28 : vector<8x32xf32>
    %50 = arith.mulf %44, %48 : vector<8x32xf32>
    %51 = arith.addf %49, %50 : vector<8x32xf32>
    %52 = math.tanh %51 : vector<8x32xf32>
    %53 = arith.mulf %46, %52 : vector<8x32xf32>
    %c1 = arith.constant 1 : index
    %c0_17 = arith.constant 0 : index
    %c0_18 = arith.constant 0 : index
    %54 = vector.load %arg10[%c1, %c0_17, %c0_18] : memref<8x8x32xf32, #tpu.memory_space<vmem>>, vector<1x8x32xf32>
    %55 = vector.shape_cast %54 : vector<1x8x32xf32> to vector<8x32xf32>
    %56 = vector.shape_cast %53 : vector<8x32xf32> to vector<1x8x32xf32>
    tpu.vector_store %arg10[%c1, %c0_17, %c0_18], %56 {strides = array<i32>} : memref<8x8x32xf32, #tpu.memory_space<vmem>>, vector<1x8x32xf32>,
    %57 = vector.extract_strided_slice %8 {offsets = [2, 0, 0], sizes = [1, 8, 128], strides = [1, 1, 1]} : vector<8x8x128xf32> to vector<1x8x128xf32>
    %58 = vector.shape_cast %57 : vector<1x8x128xf32> to vector<8x128xf32>
    %cst_19 = arith.constant dense<0.000000e+00> : vector<8x128xf32>
    %59 = tpu.matmul %53, %1, %cst_19 {dimension_numbers = #tpu.dot_dimension_numbers<[1], [0], [0], [1], [0, 0, 1, 1], [], []>} : vector<8x32xf32>, vector<32x128xf32>, vector<8x128xf32> -> vector<8x128xf32>
    %60 = arith.addf %58, %59 : vector<8x128xf32>
    %61 = vector.extract_strided_slice %60 {offsets = [0, 0], sizes = [8, 96], strides = [1, 1]} : vector<8x128xf32> to vector<8x96xf32>
    %62 = arith.negf %61 : vector<8x96xf32>
    %63 = math.exp %62 : vector<8x96xf32>
    %cst_20 = arith.constant 1.000000e+00 : f32
    %64 = vector.broadcast %cst_20 : f32 to vector<8x96xf32>
    %65 = arith.addf %64, %63 : vector<8x96xf32>
    %66 = arith.divf %64, %65 : vector<8x96xf32>
    %67 = vector.extract_strided_slice %66 {offsets = [0, 0], sizes = [8, 32], strides = [1, 1]} : vector<8x96xf32> to vector<8x32xf32>
    %68 = vector.extract_strided_slice %66 {offsets = [0, 32], sizes = [8, 32], strides = [1, 1]} : vector<8x96xf32> to vector<8x32xf32>
    %69 = vector.extract_strided_slice %66 {offsets = [0, 64], sizes = [8, 32], strides = [1, 1]} : vector<8x96xf32> to vector<8x32xf32>
    %70 = vector.extract_strided_slice %60 {offsets = [0, 96], sizes = [8, 32], strides = [1, 1]} : vector<8x128xf32> to vector<8x32xf32>
    %71 = math.tanh %70 : vector<8x32xf32>
    %72 = arith.mulf %68, %51 : vector<8x32xf32>
    %73 = arith.mulf %67, %71 : vector<8x32xf32>
    %74 = arith.addf %72, %73 : vector<8x32xf32>
    %75 = math.tanh %74 : vector<8x32xf32>
    %76 = arith.mulf %69, %75 : vector<8x32xf32>
    %c2 = arith.constant 2 : index
    %c0_21 = arith.constant 0 : index
    %c0_22 = arith.constant 0 : index
    %77 = vector.load %arg10[%c2, %c0_21, %c0_22] : memref<8x8x32xf32, #tpu.memory_space<vmem>>, vector<1x8x32xf32>
    %78 = vector.shape_cast %77 : vector<1x8x32xf32> to vector<8x32xf32>
    %79 = vector.shape_cast %76 : vector<8x32xf32> to vector<1x8x32xf32>
    tpu.vector_store %arg10[%c2, %c0_21, %c0_22], %79 {strides = array<i32>} : memref<8x8x32xf32, #tpu.memory_space<vmem>>, vector<1x8x32xf32>,
    %80 = vector.extract_strided_slice %8 {offsets = [3, 0, 0], sizes = [1, 8, 128], strides = [1, 1, 1]} : vector<8x8x128xf32> to vector<1x8x128xf32>
    %81 = vector.shape_cast %80 : vector<1x8x128xf32> to vector<8x128xf32>
    %cst_23 = arith.constant dense<0.000000e+00> : vector<8x128xf32>
    %82 = tpu.matmul %76, %1, %cst_23 {dimension_numbers = #tpu.dot_dimension_numbers<[1], [0], [0], [1], [0, 0, 1, 1], [], []>} : vector<8x32xf32>, vector<32x128xf32>, vector<8x128xf32> -> vector<8x128xf32>
    %83 = arith.addf %81, %82 : vector<8x128xf32>
    %84 = vector.extract_strided_slice %83 {offsets = [0, 0], sizes = [8, 96], strides = [1, 1]} : vector<8x128xf32> to vector<8x96xf32>
    %85 = arith.negf %84 : vector<8x96xf32>
    %86 = math.exp %85 : vector<8x96xf32>
    %cst_24 = arith.constant 1.000000e+00 : f32
    %87 = vector.broadcast %cst_24 : f32 to vector<8x96xf32>
    %88 = arith.addf %87, %86 : vector<8x96xf32>
    %89 = arith.divf %87, %88 : vector<8x96xf32>
    %90 = vector.extract_strided_slice %89 {offsets = [0, 0], sizes = [8, 32], strides = [1, 1]} : vector<8x96xf32> to vector<8x32xf32>
    %91 = vector.extract_strided_slice %89 {offsets = [0, 32], sizes = [8, 32], strides = [1, 1]} : vector<8x96xf32> to vector<8x32xf32>
    %92 = vector.extract_strided_slice %89 {offsets = [0, 64], sizes = [8, 32], strides = [1, 1]} : vector<8x96xf32> to vector<8x32xf32>
    %93 = vector.extract_strided_slice %83 {offsets = [0, 96], sizes = [8, 32], strides = [1, 1]} : vector<8x128xf32> to vector<8x32xf32>
    %94 = math.tanh %93 : vector<8x32xf32>
    %95 = arith.mulf %91, %74 : vector<8x32xf32>
    %96 = arith.mulf %90, %94 : vector<8x32xf32>
    %97 = arith.addf %95, %96 : vector<8x32xf32>
    %98 = math.tanh %97 : vector<8x32xf32>
    %99 = arith.mulf %92, %98 : vector<8x32xf32>
    %c3 = arith.constant 3 : index
    %c0_25 = arith.constant 0 : index
    %c0_26 = arith.constant 0 : index
    %100 = vector.load %arg10[%c3, %c0_25, %c0_26] : memref<8x8x32xf32, #tpu.memory_space<vmem>>, vector<1x8x32xf32>
    %101 = vector.shape_cast %100 : vector<1x8x32xf32> to vector<8x32xf32>
    %102 = vector.shape_cast %99 : vector<8x32xf32> to vector<1x8x32xf32>
    tpu.vector_store %arg10[%c3, %c0_25, %c0_26], %102 {strides = array<i32>} : memref<8x8x32xf32, #tpu.memory_space<vmem>>, vector<1x8x32xf32>,
    %103 = vector.extract_strided_slice %8 {offsets = [4, 0, 0], sizes = [1, 8, 128], strides = [1, 1, 1]} : vector<8x8x128xf32> to vector<1x8x128xf32>
    %104 = vector.shape_cast %103 : vector<1x8x128xf32> to vector<8x128xf32>
    %cst_27 = arith.constant dense<0.000000e+00> : vector<8x128xf32>
    %105 = tpu.matmul %99, %1, %cst_27 {dimension_numbers = #tpu.dot_dimension_numbers<[1], [0], [0], [1], [0, 0, 1, 1], [], []>} : vector<8x32xf32>, vector<32x128xf32>, vector<8x128xf32> -> vector<8x128xf32>
    %106 = arith.addf %104, %105 : vector<8x128xf32>
    %107 = vector.extract_strided_slice %106 {offsets = [0, 0], sizes = [8, 96], strides = [1, 1]} : vector<8x128xf32> to vector<8x96xf32>
    %108 = arith.negf %107 : vector<8x96xf32>
    %109 = math.exp %108 : vector<8x96xf32>
    %cst_28 = arith.constant 1.000000e+00 : f32
    %110 = vector.broadcast %cst_28 : f32 to vector<8x96xf32>
    %111 = arith.addf %110, %109 : vector<8x96xf32>
    %112 = arith.divf %110, %111 : vector<8x96xf32>
    %113 = vector.extract_strided_slice %112 {offsets = [0, 0], sizes = [8, 32], strides = [1, 1]} : vector<8x96xf32> to vector<8x32xf32>
    %114 = vector.extract_strided_slice %112 {offsets = [0, 32], sizes = [8, 32], strides = [1, 1]} : vector<8x96xf32> to vector<8x32xf32>
    %115 = vector.extract_strided_slice %112 {offsets = [0, 64], sizes = [8, 32], strides = [1, 1]} : vector<8x96xf32> to vector<8x32xf32>
    %116 = vector.extract_strided_slice %106 {offsets = [0, 96], sizes = [8, 32], strides = [1, 1]} : vector<8x128xf32> to vector<8x32xf32>
    %117 = math.tanh %116 : vector<8x32xf32>
    %118 = arith.mulf %114, %97 : vector<8x32xf32>
    %119 = arith.mulf %113, %117 : vector<8x32xf32>
    %120 = arith.addf %118, %119 : vector<8x32xf32>
    %121 = math.tanh %120 : vector<8x32xf32>
    %122 = arith.mulf %115, %121 : vector<8x32xf32>
    %c4 = arith.constant 4 : index
    %c0_29 = arith.constant 0 : index
    %c0_30 = arith.constant 0 : index
    %123 = vector.load %arg10[%c4, %c0_29, %c0_30] : memref<8x8x32xf32, #tpu.memory_space<vmem>>, vector<1x8x32xf32>
    %124 = vector.shape_cast %123 : vector<1x8x32xf32> to vector<8x32xf32>
    %125 = vector.shape_cast %122 : vector<8x32xf32> to vector<1x8x32xf32>
    tpu.vector_store %arg10[%c4, %c0_29, %c0_30], %125 {strides = array<i32>} : memref<8x8x32xf32, #tpu.memory_space<vmem>>, vector<1x8x32xf32>,
    %126 = vector.extract_strided_slice %8 {offsets = [5, 0, 0], sizes = [1, 8, 128], strides = [1, 1, 1]} : vector<8x8x128xf32> to vector<1x8x128xf32>
    %127 = vector.shape_cast %126 : vector<1x8x128xf32> to vector<8x128xf32>
    %cst_31 = arith.constant dense<0.000000e+00> : vector<8x128xf32>
    %128 = tpu.matmul %122, %1, %cst_31 {dimension_numbers = #tpu.dot_dimension_numbers<[1], [0], [0], [1], [0, 0, 1, 1], [], []>} : vector<8x32xf32>, vector<32x128xf32>, vector<8x128xf32> -> vector<8x128xf32>
    %129 = arith.addf %127, %128 : vector<8x128xf32>
    %130 = vector.extract_strided_slice %129 {offsets = [0, 0], sizes = [8, 96], strides = [1, 1]} : vector<8x128xf32> to vector<8x96xf32>
    %131 = arith.negf %130 : vector<8x96xf32>
    %132 = math.exp %131 : vector<8x96xf32>
    %cst_32 = arith.constant 1.000000e+00 : f32
    %133 = vector.broadcast %cst_32 : f32 to vector<8x96xf32>
    %134 = arith.addf %133, %132 : vector<8x96xf32>
    %135 = arith.divf %133, %134 : vector<8x96xf32>
    %136 = vector.extract_strided_slice %135 {offsets = [0, 0], sizes = [8, 32], strides = [1, 1]} : vector<8x96xf32> to vector<8x32xf32>
    %137 = vector.extract_strided_slice %135 {offsets = [0, 32], sizes = [8, 32], strides = [1, 1]} : vector<8x96xf32> to vector<8x32xf32>
    %138 = vector.extract_strided_slice %135 {offsets = [0, 64], sizes = [8, 32], strides = [1, 1]} : vector<8x96xf32> to vector<8x32xf32>
    %139 = vector.extract_strided_slice %129 {offsets = [0, 96], sizes = [8, 32], strides = [1, 1]} : vector<8x128xf32> to vector<8x32xf32>
    %140 = math.tanh %139 : vector<8x32xf32>
    %141 = arith.mulf %137, %120 : vector<8x32xf32>
    %142 = arith.mulf %136, %140 : vector<8x32xf32>
    %143 = arith.addf %141, %142 : vector<8x32xf32>
    %144 = math.tanh %143 : vector<8x32xf32>
    %145 = arith.mulf %138, %144 : vector<8x32xf32>
    %c5 = arith.constant 5 : index
    %c0_33 = arith.constant 0 : index
    %c0_34 = arith.constant 0 : index
    %146 = vector.load %arg10[%c5, %c0_33, %c0_34] : memref<8x8x32xf32, #tpu.memory_space<vmem>>, vector<1x8x32xf32>
    %147 = vector.shape_cast %146 : vector<1x8x32xf32> to vector<8x32xf32>
    %148 = vector.shape_cast %145 : vector<8x32xf32> to vector<1x8x32xf32>
    tpu.vector_store %arg10[%c5, %c0_33, %c0_34], %148 {strides = array<i32>} : memref<8x8x32xf32, #tpu.memory_space<vmem>>, vector<1x8x32xf32>,
    %149 = vector.extract_strided_slice %8 {offsets = [6, 0, 0], sizes = [1, 8, 128], strides = [1, 1, 1]} : vector<8x8x128xf32> to vector<1x8x128xf32>
    %150 = vector.shape_cast %149 : vector<1x8x128xf32> to vector<8x128xf32>
    %cst_35 = arith.constant dense<0.000000e+00> : vector<8x128xf32>
    %151 = tpu.matmul %145, %1, %cst_35 {dimension_numbers = #tpu.dot_dimension_numbers<[1], [0], [0], [1], [0, 0, 1, 1], [], []>} : vector<8x32xf32>, vector<32x128xf32>, vector<8x128xf32> -> vector<8x128xf32>
    %152 = arith.addf %150, %151 : vector<8x128xf32>
    %153 = vector.extract_strided_slice %152 {offsets = [0, 0], sizes = [8, 96], strides = [1, 1]} : vector<8x128xf32> to vector<8x96xf32>
    %154 = arith.negf %153 : vector<8x96xf32>
    %155 = math.exp %154 : vector<8x96xf32>
    %cst_36 = arith.constant 1.000000e+00 : f32
    %156 = vector.broadcast %cst_36 : f32 to vector<8x96xf32>
    %157 = arith.addf %156, %155 : vector<8x96xf32>
    %158 = arith.divf %156, %157 : vector<8x96xf32>
    %159 = vector.extract_strided_slice %158 {offsets = [0, 0], sizes = [8, 32], strides = [1, 1]} : vector<8x96xf32> to vector<8x32xf32>
    %160 = vector.extract_strided_slice %158 {offsets = [0, 32], sizes = [8, 32], strides = [1, 1]} : vector<8x96xf32> to vector<8x32xf32>
    %161 = vector.extract_strided_slice %158 {offsets = [0, 64], sizes = [8, 32], strides = [1, 1]} : vector<8x96xf32> to vector<8x32xf32>
    %162 = vector.extract_strided_slice %152 {offsets = [0, 96], sizes = [8, 32], strides = [1, 1]} : vector<8x128xf32> to vector<8x32xf32>
    %163 = math.tanh %162 : vector<8x32xf32>
    %164 = arith.mulf %160, %143 : vector<8x32xf32>
    %165 = arith.mulf %159, %163 : vector<8x32xf32>
    %166 = arith.addf %164, %165 : vector<8x32xf32>
    %167 = math.tanh %166 : vector<8x32xf32>
    %168 = arith.mulf %161, %167 : vector<8x32xf32>
    %c6 = arith.constant 6 : index
    %c0_37 = arith.constant 0 : index
    %c0_38 = arith.constant 0 : index
    %169 = vector.load %arg10[%c6, %c0_37, %c0_38] : memref<8x8x32xf32, #tpu.memory_space<vmem>>, vector<1x8x32xf32>
    %170 = vector.shape_cast %169 : vector<1x8x32xf32> to vector<8x32xf32>
    %171 = vector.shape_cast %168 : vector<8x32xf32> to vector<1x8x32xf32>
    tpu.vector_store %arg10[%c6, %c0_37, %c0_38], %171 {strides = array<i32>} : memref<8x8x32xf32, #tpu.memory_space<vmem>>, vector<1x8x32xf32>,
    %172 = vector.extract_strided_slice %8 {offsets = [7, 0, 0], sizes = [1, 8, 128], strides = [1, 1, 1]} : vector<8x8x128xf32> to vector<1x8x128xf32>
    %173 = vector.shape_cast %172 : vector<1x8x128xf32> to vector<8x128xf32>
    %cst_39 = arith.constant dense<0.000000e+00> : vector<8x128xf32>
    %174 = tpu.matmul %168, %1, %cst_39 {dimension_numbers = #tpu.dot_dimension_numbers<[1], [0], [0], [1], [0, 0, 1, 1], [], []>} : vector<8x32xf32>, vector<32x128xf32>, vector<8x128xf32> -> vector<8x128xf32>
    %175 = arith.addf %173, %174 : vector<8x128xf32>
    %176 = vector.extract_strided_slice %175 {offsets = [0, 0], sizes = [8, 96], strides = [1, 1]} : vector<8x128xf32> to vector<8x96xf32>
    %177 = arith.negf %176 : vector<8x96xf32>
    %178 = math.exp %177 : vector<8x96xf32>
    %cst_40 = arith.constant 1.000000e+00 : f32
    %179 = vector.broadcast %cst_40 : f32 to vector<8x96xf32>
    %180 = arith.addf %179, %178 : vector<8x96xf32>
    %181 = arith.divf %179, %180 : vector<8x96xf32>
    %182 = vector.extract_strided_slice %181 {offsets = [0, 0], sizes = [8, 32], strides = [1, 1]} : vector<8x96xf32> to vector<8x32xf32>
    %183 = vector.extract_strided_slice %181 {offsets = [0, 32], sizes = [8, 32], strides = [1, 1]} : vector<8x96xf32> to vector<8x32xf32>
    %184 = vector.extract_strided_slice %181 {offsets = [0, 64], sizes = [8, 32], strides = [1, 1]} : vector<8x96xf32> to vector<8x32xf32>
    %185 = vector.extract_strided_slice %175 {offsets = [0, 96], sizes = [8, 32], strides = [1, 1]} : vector<8x128xf32> to vector<8x32xf32>
    %186 = math.tanh %185 : vector<8x32xf32>
    %187 = arith.mulf %183, %166 : vector<8x32xf32>
    %188 = arith.mulf %182, %186 : vector<8x32xf32>
    %189 = arith.addf %187, %188 : vector<8x32xf32>
    %190 = math.tanh %189 : vector<8x32xf32>
    %191 = arith.mulf %184, %190 : vector<8x32xf32>
    %c7 = arith.constant 7 : index
    %c0_41 = arith.constant 0 : index
    %c0_42 = arith.constant 0 : index
    %192 = vector.load %arg10[%c7, %c0_41, %c0_42] : memref<8x8x32xf32, #tpu.memory_space<vmem>>, vector<1x8x32xf32>
    %193 = vector.shape_cast %192 : vector<1x8x32xf32> to vector<8x32xf32>
    %194 = vector.shape_cast %191 : vector<8x32xf32> to vector<1x8x32xf32>
    tpu.vector_store %arg10[%c7, %c0_41, %c0_42], %194 {strides = array<i32>} : memref<8x8x32xf32, #tpu.memory_space<vmem>>, vector<1x8x32xf32>,
    %c0_43 = arith.constant 0 : index
    %c0_44 = arith.constant 0 : index
    %195 = vector.load %arg4[%c0_43, %c0_44] : memref<32x128xf32, #tpu.memory_space<vmem>>, vector<32x128xf32>
    %c0_45 = arith.constant 0 : index
    %c0_46 = arith.constant 0 : index
    %196 = vector.load %arg5[%c0_45, %c0_46] : memref<32x128xf32, #tpu.memory_space<vmem>>, vector<32x128xf32>
    %c0_47 = arith.constant 0 : index
    %c0_48 = arith.constant 0 : index
    %197 = vector.load %arg6[%c0_47, %c0_48] : memref<1x128xf32, #tpu.memory_space<vmem>>, vector<1x128xf32>
    %c0_49 = arith.constant 0 : index
    %c0_50 = arith.constant 0 : index
    %c0_51 = arith.constant 0 : index
    %198 = vector.load %arg10[%c0_49, %c0_50, %c0_51] : memref<8x8x32xf32, #tpu.memory_space<vmem>>, vector<8x8x32xf32>
    %199 = vector.shape_cast %198 : vector<8x8x32xf32> to vector<64x32xf32>
    %cst_52 = arith.constant dense<0.000000e+00> : vector<64x128xf32>
    %200 = tpu.matmul %199, %195, %cst_52 {dimension_numbers = #tpu.dot_dimension_numbers<[1], [0], [0], [1], [0, 0, 1, 1], [], []>} : vector<64x32xf32>, vector<32x128xf32>, vector<64x128xf32> -> vector<64x128xf32>
    %201 = vector.broadcast %197 : vector<1x128xf32> to vector<64x128xf32>
    %202 = arith.addf %200, %201 : vector<64x128xf32>
    %203 = vector.shape_cast %202 : vector<64x128xf32> to vector<8x8x128xf32>
    %cst_53 = arith.constant 0.000000e+00 : f32
    %204 = vector.broadcast %cst_53 : f32 to vector<8x32xf32>
    %cst_54 = arith.constant 0.000000e+00 : f32
    %205 = vector.broadcast %cst_54 : f32 to vector<8x32xf32>
    %206 = vector.extract_strided_slice %203 {offsets = [0, 0, 0], sizes = [1, 8, 128], strides = [1, 1, 1]} : vector<8x8x128xf32> to vector<1x8x128xf32>
    %207 = vector.shape_cast %206 : vector<1x8x128xf32> to vector<8x128xf32>
    %cst_55 = arith.constant dense<0.000000e+00> : vector<8x128xf32>
    %208 = tpu.matmul %204, %196, %cst_55 {dimension_numbers = #tpu.dot_dimension_numbers<[1], [0], [0], [1], [0, 0, 1, 1], [], []>} : vector<8x32xf32>, vector<32x128xf32>, vector<8x128xf32> -> vector<8x128xf32>
    %209 = arith.addf %207, %208 : vector<8x128xf32>
    %210 = vector.extract_strided_slice %209 {offsets = [0, 0], sizes = [8, 96], strides = [1, 1]} : vector<8x128xf32> to vector<8x96xf32>
    %211 = arith.negf %210 : vector<8x96xf32>
    %212 = math.exp %211 : vector<8x96xf32>
    %cst_56 = arith.constant 1.000000e+00 : f32
    %213 = vector.broadcast %cst_56 : f32 to vector<8x96xf32>
    %214 = arith.addf %213, %212 : vector<8x96xf32>
    %215 = arith.divf %213, %214 : vector<8x96xf32>
    %216 = vector.extract_strided_slice %215 {offsets = [0, 0], sizes = [8, 32], strides = [1, 1]} : vector<8x96xf32> to vector<8x32xf32>
    %217 = vector.extract_strided_slice %215 {offsets = [0, 32], sizes = [8, 32], strides = [1, 1]} : vector<8x96xf32> to vector<8x32xf32>
    %218 = vector.extract_strided_slice %215 {offsets = [0, 64], sizes = [8, 32], strides = [1, 1]} : vector<8x96xf32> to vector<8x32xf32>
    %219 = vector.extract_strided_slice %209 {offsets = [0, 96], sizes = [8, 32], strides = [1, 1]} : vector<8x128xf32> to vector<8x32xf32>
    %220 = math.tanh %219 : vector<8x32xf32>
    %221 = arith.mulf %217, %205 : vector<8x32xf32>
    %222 = arith.mulf %216, %220 : vector<8x32xf32>
    %223 = arith.addf %221, %222 : vector<8x32xf32>
    %224 = math.tanh %223 : vector<8x32xf32>
    %225 = arith.mulf %218, %224 : vector<8x32xf32>
    %226 = vector.extract_strided_slice %203 {offsets = [1, 0, 0], sizes = [1, 8, 128], strides = [1, 1, 1]} : vector<8x8x128xf32> to vector<1x8x128xf32>
    %227 = vector.shape_cast %226 : vector<1x8x128xf32> to vector<8x128xf32>
    %cst_57 = arith.constant dense<0.000000e+00> : vector<8x128xf32>
    %228 = tpu.matmul %225, %196, %cst_57 {dimension_numbers = #tpu.dot_dimension_numbers<[1], [0], [0], [1], [0, 0, 1, 1], [], []>} : vector<8x32xf32>, vector<32x128xf32>, vector<8x128xf32> -> vector<8x128xf32>
    %229 = arith.addf %227, %228 : vector<8x128xf32>
    %230 = vector.extract_strided_slice %229 {offsets = [0, 0], sizes = [8, 96], strides = [1, 1]} : vector<8x128xf32> to vector<8x96xf32>
    %231 = arith.negf %230 : vector<8x96xf32>
    %232 = math.exp %231 : vector<8x96xf32>
    %cst_58 = arith.constant 1.000000e+00 : f32
    %233 = vector.broadcast %cst_58 : f32 to vector<8x96xf32>
    %234 = arith.addf %233, %232 : vector<8x96xf32>
    %235 = arith.divf %233, %234 : vector<8x96xf32>
    %236 = vector.extract_strided_slice %235 {offsets = [0, 0], sizes = [8, 32], strides = [1, 1]} : vector<8x96xf32> to vector<8x32xf32>
    %237 = vector.extract_strided_slice %235 {offsets = [0, 32], sizes = [8, 32], strides = [1, 1]} : vector<8x96xf32> to vector<8x32xf32>
    %238 = vector.extract_strided_slice %235 {offsets = [0, 64], sizes = [8, 32], strides = [1, 1]} : vector<8x96xf32> to vector<8x32xf32>
    %239 = vector.extract_strided_slice %229 {offsets = [0, 96], sizes = [8, 32], strides = [1, 1]} : vector<8x128xf32> to vector<8x32xf32>
    %240 = math.tanh %239 : vector<8x32xf32>
    %241 = arith.mulf %237, %223 : vector<8x32xf32>
    %242 = arith.mulf %236, %240 : vector<8x32xf32>
    %243 = arith.addf %241, %242 : vector<8x32xf32>
    %244 = math.tanh %243 : vector<8x32xf32>
    %245 = arith.mulf %238, %244 : vector<8x32xf32>
    %246 = vector.extract_strided_slice %203 {offsets = [2, 0, 0], sizes = [1, 8, 128], strides = [1, 1, 1]} : vector<8x8x128xf32> to vector<1x8x128xf32>
    %247 = vector.shape_cast %246 : vector<1x8x128xf32> to vector<8x128xf32>
    %cst_59 = arith.constant dense<0.000000e+00> : vector<8x128xf32>
    %248 = tpu.matmul %245, %196, %cst_59 {dimension_numbers = #tpu.dot_dimension_numbers<[1], [0], [0], [1], [0, 0, 1, 1], [], []>} : vector<8x32xf32>, vector<32x128xf32>, vector<8x128xf32> -> vector<8x128xf32>
    %249 = arith.addf %247, %248 : vector<8x128xf32>
    %250 = vector.extract_strided_slice %249 {offsets = [0, 0], sizes = [8, 96], strides = [1, 1]} : vector<8x128xf32> to vector<8x96xf32>
    %251 = arith.negf %250 : vector<8x96xf32>
    %252 = math.exp %251 : vector<8x96xf32>
    %cst_60 = arith.constant 1.000000e+00 : f32
    %253 = vector.broadcast %cst_60 : f32 to vector<8x96xf32>
    %254 = arith.addf %253, %252 : vector<8x96xf32>
    %255 = arith.divf %253, %254 : vector<8x96xf32>
    %256 = vector.extract_strided_slice %255 {offsets = [0, 0], sizes = [8, 32], strides = [1, 1]} : vector<8x96xf32> to vector<8x32xf32>
    %257 = vector.extract_strided_slice %255 {offsets = [0, 32], sizes = [8, 32], strides = [1, 1]} : vector<8x96xf32> to vector<8x32xf32>
    %258 = vector.extract_strided_slice %255 {offsets = [0, 64], sizes = [8, 32], strides = [1, 1]} : vector<8x96xf32> to vector<8x32xf32>
    %259 = vector.extract_strided_slice %249 {offsets = [0, 96], sizes = [8, 32], strides = [1, 1]} : vector<8x128xf32> to vector<8x32xf32>
    %260 = math.tanh %259 : vector<8x32xf32>
    %261 = arith.mulf %257, %243 : vector<8x32xf32>
    %262 = arith.mulf %256, %260 : vector<8x32xf32>
    %263 = arith.addf %261, %262 : vector<8x32xf32>
    %264 = math.tanh %263 : vector<8x32xf32>
    %265 = arith.mulf %258, %264 : vector<8x32xf32>
    %266 = vector.extract_strided_slice %203 {offsets = [3, 0, 0], sizes = [1, 8, 128], strides = [1, 1, 1]} : vector<8x8x128xf32> to vector<1x8x128xf32>
    %267 = vector.shape_cast %266 : vector<1x8x128xf32> to vector<8x128xf32>
    %cst_61 = arith.constant dense<0.000000e+00> : vector<8x128xf32>
    %268 = tpu.matmul %265, %196, %cst_61 {dimension_numbers = #tpu.dot_dimension_numbers<[1], [0], [0], [1], [0, 0, 1, 1], [], []>} : vector<8x32xf32>, vector<32x128xf32>, vector<8x128xf32> -> vector<8x128xf32>
    %269 = arith.addf %267, %268 : vector<8x128xf32>
    %270 = vector.extract_strided_slice %269 {offsets = [0, 0], sizes = [8, 96], strides = [1, 1]} : vector<8x128xf32> to vector<8x96xf32>
    %271 = arith.negf %270 : vector<8x96xf32>
    %272 = math.exp %271 : vector<8x96xf32>
    %cst_62 = arith.constant 1.000000e+00 : f32
    %273 = vector.broadcast %cst_62 : f32 to vector<8x96xf32>
    %274 = arith.addf %273, %272 : vector<8x96xf32>
    %275 = arith.divf %273, %274 : vector<8x96xf32>
    %276 = vector.extract_strided_slice %275 {offsets = [0, 0], sizes = [8, 32], strides = [1, 1]} : vector<8x96xf32> to vector<8x32xf32>
    %277 = vector.extract_strided_slice %275 {offsets = [0, 32], sizes = [8, 32], strides = [1, 1]} : vector<8x96xf32> to vector<8x32xf32>
    %278 = vector.extract_strided_slice %275 {offsets = [0, 64], sizes = [8, 32], strides = [1, 1]} : vector<8x96xf32> to vector<8x32xf32>
    %279 = vector.extract_strided_slice %269 {offsets = [0, 96], sizes = [8, 32], strides = [1, 1]} : vector<8x128xf32> to vector<8x32xf32>
    %280 = math.tanh %279 : vector<8x32xf32>
    %281 = arith.mulf %277, %263 : vector<8x32xf32>
    %282 = arith.mulf %276, %280 : vector<8x32xf32>
    %283 = arith.addf %281, %282 : vector<8x32xf32>
    %284 = math.tanh %283 : vector<8x32xf32>
    %285 = arith.mulf %278, %284 : vector<8x32xf32>
    %286 = vector.extract_strided_slice %203 {offsets = [4, 0, 0], sizes = [1, 8, 128], strides = [1, 1, 1]} : vector<8x8x128xf32> to vector<1x8x128xf32>
    %287 = vector.shape_cast %286 : vector<1x8x128xf32> to vector<8x128xf32>
    %cst_63 = arith.constant dense<0.000000e+00> : vector<8x128xf32>
    %288 = tpu.matmul %285, %196, %cst_63 {dimension_numbers = #tpu.dot_dimension_numbers<[1], [0], [0], [1], [0, 0, 1, 1], [], []>} : vector<8x32xf32>, vector<32x128xf32>, vector<8x128xf32> -> vector<8x128xf32>
    %289 = arith.addf %287, %288 : vector<8x128xf32>
    %290 = vector.extract_strided_slice %289 {offsets = [0, 0], sizes = [8, 96], strides = [1, 1]} : vector<8x128xf32> to vector<8x96xf32>
    %291 = arith.negf %290 : vector<8x96xf32>
    %292 = math.exp %291 : vector<8x96xf32>
    %cst_64 = arith.constant 1.000000e+00 : f32
    %293 = vector.broadcast %cst_64 : f32 to vector<8x96xf32>
    %294 = arith.addf %293, %292 : vector<8x96xf32>
    %295 = arith.divf %293, %294 : vector<8x96xf32>
    %296 = vector.extract_strided_slice %295 {offsets = [0, 0], sizes = [8, 32], strides = [1, 1]} : vector<8x96xf32> to vector<8x32xf32>
    %297 = vector.extract_strided_slice %295 {offsets = [0, 32], sizes = [8, 32], strides = [1, 1]} : vector<8x96xf32> to vector<8x32xf32>
    %298 = vector.extract_strided_slice %295 {offsets = [0, 64], sizes = [8, 32], strides = [1, 1]} : vector<8x96xf32> to vector<8x32xf32>
    %299 = vector.extract_strided_slice %289 {offsets = [0, 96], sizes = [8, 32], strides = [1, 1]} : vector<8x128xf32> to vector<8x32xf32>
    %300 = math.tanh %299 : vector<8x32xf32>
    %301 = arith.mulf %297, %283 : vector<8x32xf32>
    %302 = arith.mulf %296, %300 : vector<8x32xf32>
    %303 = arith.addf %301, %302 : vector<8x32xf32>
    %304 = math.tanh %303 : vector<8x32xf32>
    %305 = arith.mulf %298, %304 : vector<8x32xf32>
    %306 = vector.extract_strided_slice %203 {offsets = [5, 0, 0], sizes = [1, 8, 128], strides = [1, 1, 1]} : vector<8x8x128xf32> to vector<1x8x128xf32>
    %307 = vector.shape_cast %306 : vector<1x8x128xf32> to vector<8x128xf32>
    %cst_65 = arith.constant dense<0.000000e+00> : vector<8x128xf32>
    %308 = tpu.matmul %305, %196, %cst_65 {dimension_numbers = #tpu.dot_dimension_numbers<[1], [0], [0], [1], [0, 0, 1, 1], [], []>} : vector<8x32xf32>, vector<32x128xf32>, vector<8x128xf32> -> vector<8x128xf32>
    %309 = arith.addf %307, %308 : vector<8x128xf32>
    %310 = vector.extract_strided_slice %309 {offsets = [0, 0], sizes = [8, 96], strides = [1, 1]} : vector<8x128xf32> to vector<8x96xf32>
    %311 = arith.negf %310 : vector<8x96xf32>
    %312 = math.exp %311 : vector<8x96xf32>
    %cst_66 = arith.constant 1.000000e+00 : f32
    %313 = vector.broadcast %cst_66 : f32 to vector<8x96xf32>
    %314 = arith.addf %313, %312 : vector<8x96xf32>
    %315 = arith.divf %313, %314 : vector<8x96xf32>
    %316 = vector.extract_strided_slice %315 {offsets = [0, 0], sizes = [8, 32], strides = [1, 1]} : vector<8x96xf32> to vector<8x32xf32>
    %317 = vector.extract_strided_slice %315 {offsets = [0, 32], sizes = [8, 32], strides = [1, 1]} : vector<8x96xf32> to vector<8x32xf32>
    %318 = vector.extract_strided_slice %315 {offsets = [0, 64], sizes = [8, 32], strides = [1, 1]} : vector<8x96xf32> to vector<8x32xf32>
    %319 = vector.extract_strided_slice %309 {offsets = [0, 96], sizes = [8, 32], strides = [1, 1]} : vector<8x128xf32> to vector<8x32xf32>
    %320 = math.tanh %319 : vector<8x32xf32>
    %321 = arith.mulf %317, %303 : vector<8x32xf32>
    %322 = arith.mulf %316, %320 : vector<8x32xf32>
    %323 = arith.addf %321, %322 : vector<8x32xf32>
    %324 = math.tanh %323 : vector<8x32xf32>
    %325 = arith.mulf %318, %324 : vector<8x32xf32>
    %326 = vector.extract_strided_slice %203 {offsets = [6, 0, 0], sizes = [1, 8, 128], strides = [1, 1, 1]} : vector<8x8x128xf32> to vector<1x8x128xf32>
    %327 = vector.shape_cast %326 : vector<1x8x128xf32> to vector<8x128xf32>
    %cst_67 = arith.constant dense<0.000000e+00> : vector<8x128xf32>
    %328 = tpu.matmul %325, %196, %cst_67 {dimension_numbers = #tpu.dot_dimension_numbers<[1], [0], [0], [1], [0, 0, 1, 1], [], []>} : vector<8x32xf32>, vector<32x128xf32>, vector<8x128xf32> -> vector<8x128xf32>
    %329 = arith.addf %327, %328 : vector<8x128xf32>
    %330 = vector.extract_strided_slice %329 {offsets = [0, 0], sizes = [8, 96], strides = [1, 1]} : vector<8x128xf32> to vector<8x96xf32>
    %331 = arith.negf %330 : vector<8x96xf32>
    %332 = math.exp %331 : vector<8x96xf32>
    %cst_68 = arith.constant 1.000000e+00 : f32
    %333 = vector.broadcast %cst_68 : f32 to vector<8x96xf32>
    %334 = arith.addf %333, %332 : vector<8x96xf32>
    %335 = arith.divf %333, %334 : vector<8x96xf32>
    %336 = vector.extract_strided_slice %335 {offsets = [0, 0], sizes = [8, 32], strides = [1, 1]} : vector<8x96xf32> to vector<8x32xf32>
    %337 = vector.extract_strided_slice %335 {offsets = [0, 32], sizes = [8, 32], strides = [1, 1]} : vector<8x96xf32> to vector<8x32xf32>
    %338 = vector.extract_strided_slice %335 {offsets = [0, 64], sizes = [8, 32], strides = [1, 1]} : vector<8x96xf32> to vector<8x32xf32>
    %339 = vector.extract_strided_slice %329 {offsets = [0, 96], sizes = [8, 32], strides = [1, 1]} : vector<8x128xf32> to vector<8x32xf32>
    %340 = math.tanh %339 : vector<8x32xf32>
    %341 = arith.mulf %337, %323 : vector<8x32xf32>
    %342 = arith.mulf %336, %340 : vector<8x32xf32>
    %343 = arith.addf %341, %342 : vector<8x32xf32>
    %344 = math.tanh %343 : vector<8x32xf32>
    %345 = arith.mulf %338, %344 : vector<8x32xf32>
    %346 = vector.extract_strided_slice %203 {offsets = [7, 0, 0], sizes = [1, 8, 128], strides = [1, 1, 1]} : vector<8x8x128xf32> to vector<1x8x128xf32>
    %347 = vector.shape_cast %346 : vector<1x8x128xf32> to vector<8x128xf32>
    %cst_69 = arith.constant dense<0.000000e+00> : vector<8x128xf32>
    %348 = tpu.matmul %345, %196, %cst_69 {dimension_numbers = #tpu.dot_dimension_numbers<[1], [0], [0], [1], [0, 0, 1, 1], [], []>} : vector<8x32xf32>, vector<32x128xf32>, vector<8x128xf32> -> vector<8x128xf32>
    %349 = arith.addf %347, %348 : vector<8x128xf32>
    %350 = vector.extract_strided_slice %349 {offsets = [0, 0], sizes = [8, 96], strides = [1, 1]} : vector<8x128xf32> to vector<8x96xf32>
    %351 = arith.negf %350 : vector<8x96xf32>
    %352 = math.exp %351 : vector<8x96xf32>
    %cst_70 = arith.constant 1.000000e+00 : f32
    %353 = vector.broadcast %cst_70 : f32 to vector<8x96xf32>
    %354 = arith.addf %353, %352 : vector<8x96xf32>
    %355 = arith.divf %353, %354 : vector<8x96xf32>
    %356 = vector.extract_strided_slice %355 {offsets = [0, 0], sizes = [8, 32], strides = [1, 1]} : vector<8x96xf32> to vector<8x32xf32>
    %357 = vector.extract_strided_slice %355 {offsets = [0, 32], sizes = [8, 32], strides = [1, 1]} : vector<8x96xf32> to vector<8x32xf32>
    %358 = vector.extract_strided_slice %355 {offsets = [0, 64], sizes = [8, 32], strides = [1, 1]} : vector<8x96xf32> to vector<8x32xf32>
    %359 = vector.extract_strided_slice %349 {offsets = [0, 96], sizes = [8, 32], strides = [1, 1]} : vector<8x128xf32> to vector<8x32xf32>
    %360 = math.tanh %359 : vector<8x32xf32>
    %361 = arith.mulf %357, %343 : vector<8x32xf32>
    %362 = arith.mulf %356, %360 : vector<8x32xf32>
    %363 = arith.addf %361, %362 : vector<8x32xf32>
    %364 = math.tanh %363 : vector<8x32xf32>
    %365 = arith.mulf %358, %364 : vector<8x32xf32>
    %c0_71 = arith.constant 0 : index
    %c0_72 = arith.constant 0 : index
    %366 = vector.load %arg7[%c0_71, %c0_72] : memref<32x1xf32, #tpu.memory_space<vmem>>, vector<32x1xf32>
    %cst_73 = arith.constant dense<0.000000e+00> : vector<8x1xf32>
    %367 = tpu.matmul %365, %366, %cst_73 {dimension_numbers = #tpu.dot_dimension_numbers<[1], [0], [0], [1], [0, 0, 1, 1], [], []>} : vector<8x32xf32>, vector<32x1xf32>, vector<8x1xf32> -> vector<8x1xf32>
    %c0_74 = arith.constant 0 : index
    %c0_75 = arith.constant 0 : index
    %368 = vector.load %arg8[%c0_74, %c0_75] : memref<1x1xf32, #tpu.memory_space<vmem>>, vector<1x1xf32>
    %369 = vector.broadcast %368 : vector<1x1xf32> to vector<8x1xf32>
    %370 = arith.addf %367, %369 : vector<8x1xf32>
    %c0_76 = arith.constant 0 : index
    %c0_77 = arith.constant 0 : index
    %371 = vector.load %arg9[%c0_76, %c0_77] : memref<8x1xf32, #tpu.memory_space<vmem>>, vector<8x1xf32>
    tpu.vector_store %arg9[%c0_76, %c0_77], %370 {strides = array<i32>} : memref<8x1xf32, #tpu.memory_space<vmem>>, vector<8x1xf32>,
    return
  }
}

</mosaic_0001>

<llo_original>
// kernel: tpu_custom_call.1
$region0: #{tpu_custom_call.1}
  #allocation0 [shape = 'u32[]', space=smem, size = 0x4, offset = 0x4, fixed_abs, tag = 'smem constant byte address 0x4 - core index']
  #allocation1 [shape = 'u32[144,128]{1,0:T(1,128)}', space=vmem, size = 0x12000, scoped, tag = 'internal scratch']
  #allocation2 [shape = 'f32[8,8,32]{2,1,0:T(8,128)}', space=vmem, size = 0x8000, scoped, tag = 'scratch operand']
  #allocation3 [shape = 'f32[1,1]{1,0:T(1,128)S(1)}', space=vmem, size = 0x200, scoped, tag = 'scoped memory for tpu_custom_call.1']
  %s0 = inlined_call_operand.vmem [shape: f32[8,8,4], index: 0, kind: input, shape index: {}]
  %s1 = inlined_call_operand.vmem [shape: f32[4,128], index: 1, kind: input, shape index: {}]
  %s2 = inlined_call_operand.vmem [shape: f32[32,128], index: 2, kind: input, shape index: {}]
  %s3 = inlined_call_operand.vmem [shape: f32[1,128], index: 3, kind: input, shape index: {}]
  %s4 = inlined_call_operand.vmem [shape: f32[32,128], index: 4, kind: input, shape index: {}]
  %s5 = inlined_call_operand.vmem [shape: f32[32,128], index: 5, kind: input, shape index: {}]
  %s6 = inlined_call_operand.vmem [shape: f32[1,128], index: 6, kind: input, shape index: {}]
  %s7 = inlined_call_operand.vmem [shape: f32[32,1], index: 7, kind: input, shape index: {}]
  %s8 = inlined_call_operand.<no memory space> [shape: f32[1,1], index: 8, kind: input, shape index: {}]
  %s9 = inlined_call_operand.vmem [shape: f32[8,1], index: 9, kind: output, shape index: {}]
  %s10 = sld [smem:[#allocation0]]
  $region46: #{tpu_custom_call.1} parent=0
    _
  %s12 = ssub.s32 1, %s10
  %s13 = scalar_select 0, %s12, %s10
  %v14 = vstv %s8
  %15 = vst [vmem:[#allocation3] sm:$0x1] %v14
  // Predicated region
  $region2: #{tpu_custom_call.1} parent=0 // pred_check
    _
  $region3: #{tpu_custom_call.1} parent=0 // pred_check_branch
    %17 = sbr.rel (0) target = $region5
  $region4: #{tpu_custom_call.1} parent=0 // pred_region
    _
  $region5: #{tpu_custom_call.1} parent=0 // pred_fallthru
    _
  // Predicated region
  $region6: #{tpu_custom_call.1} parent=0 // pred_check
    _
  $region7: #{tpu_custom_call.1} parent=0 // pred_check_branch
    %19 = sbr.rel (0) target = $region9
  $region8: #{tpu_custom_call.1} parent=0 // pred_region
    _
  $region9: #{tpu_custom_call.1} parent=0 // pred_fallthru
    _
  // Predicated region
  $region10: #{tpu_custom_call.1} parent=0 // pred_check
    _
  $region11: #{tpu_custom_call.1} parent=0 // pred_check_branch
    %21 = sbr.rel (0) target = $region13
  $region12: #{tpu_custom_call.1} parent=0 // pred_region
    _
  $region13: #{tpu_custom_call.1} parent=0 // pred_fallthru
    _
  // Predicated region
  $region14: #{tpu_custom_call.1} parent=0 // pred_check
    _
  $region15: #{tpu_custom_call.1} parent=0 // pred_check_branch
    %23 = sbr.rel (0) target = $region17
  $region16: #{tpu_custom_call.1} parent=0 // pred_region
    _
  $region17: #{tpu_custom_call.1} parent=0 // pred_fallthru
    _
  // Predicated region
  $region18: #{tpu_custom_call.1} parent=0 // pred_check
    _
  $region19: #{tpu_custom_call.1} parent=0 // pred_check_branch
    %25 = sbr.rel (0) target = $region21
  $region20: #{tpu_custom_call.1} parent=0 // pred_region
    _
  $region21: #{tpu_custom_call.1} parent=0 // pred_fallthru
    _
  // Predicated region
  $region22: #{tpu_custom_call.1} parent=0 // pred_check
    _
  $region23: #{tpu_custom_call.1} parent=0 // pred_check_branch
    %27 = sbr.rel (0) target = $region25
  $region24: #{tpu_custom_call.1} parent=0 // pred_region
    _
  $region25: #{tpu_custom_call.1} parent=0 // pred_fallthru
    _
  // Predicated region
  $region26: #{tpu_custom_call.1} parent=0 // pred_check
    _
  $region27: #{tpu_custom_call.1} parent=0 // pred_check_branch
    %29 = sbr.rel (0) target = $region29
  $region28: #{tpu_custom_call.1} parent=0 // pred_region
    _
  $region29: #{tpu_custom_call.1} parent=0 // pred_fallthru
    _
  // Predicated region
  $region30: #{tpu_custom_call.1} parent=0 // pred_check
    _
  $region31: #{tpu_custom_call.1} parent=0 // pred_check_branch
    %31 = sbr.rel (0) target = $region33
  $region32: #{tpu_custom_call.1} parent=0 // pred_region
    _
  $region33: #{tpu_custom_call.1} parent=0 // pred_fallthru
    _
  // Predicated region
  $region34: #{tpu_custom_call.1} parent=0 // pred_check
    _
  $region35: #{tpu_custom_call.1} parent=0 // pred_check_branch
    %33 = sbr.rel (0) target = $region37
  $region36: #{tpu_custom_call.1} parent=0 // pred_region
    _
  $region37: #{tpu_custom_call.1} parent=0 // pred_fallthru
    _
  %v34 = vld [vmem:[%s1] sm:$0xf]
  %v35 = vld [vmem:[%s2] sm:$0xff]
  %v36 = vld [vmem:[%s2 + $0x8] sm:$0xff]
  %v37 = vld [vmem:[%s2 + $0x10] sm:$0xff]
  %v38 = vld [vmem:[%s2 + $0x18] sm:$0xff]
  %v39 = vld [vmem:[%s3] sm:$0x1]
  %v40 = vld [vmem:[%s0] sm:$0xff]
  %v41 = vld [vmem:[%s0 + $0x8] sm:$0xff]
  %v42 = vld [vmem:[%s0 + $0x10] sm:$0xff]
  %v43 = vld [vmem:[%s0 + $0x18] sm:$0xff]
  %v44 = vld [vmem:[%s0 + $0x20] sm:$0xff]
  %v45 = vld [vmem:[%s0 + $0x28] sm:$0xff]
  %v46 = vld [vmem:[%s0 + $0x30] sm:$0xff]
  %v47 = vld [vmem:[%s0 + $0x38] sm:$0xff]
  %v49 = vlaneseq
  %v50 = vshrl.u32 %v49, 7
  %v51 = vsub.s32 0, %v50
  %v52 = vrot.slane %v39, %v51
  %vm54 = vcmask 31744
  %v56 = vsel %vm54, %v40, 0
  %v59 = vsel %vm54, %v41, 0
  %v62 = vsel %vm54, %v42, 0
  %v65 = vsel %vm54, %v43, 0
  %v68 = vsel %vm54, %v44, 0
  %v71 = vsel %vm54, %v45, 0
  %v74 = vsel %vm54, %v46, 0
  %v77 = vsel %vm54, %v47, 0
  %vm79 = vcmask 1043456
  %v81 = vsel %vm79, %v34, 0
  %83 = vmatprep.subr.mxu0 0.0
  %84 = vmatpush1.msra.mxu0 %v81
  %85 = vmatprep.subr.mxu0 0.0
  %86 = vmatpush1.msra.mxu0 0.0
  %87 = vmatprep.subr.mxu0 0.0
  %88 = vmatpush1.msra.mxu0 0.0
  %89 = vmatprep.subr.mxu0 0.0
  %90 = vmatpush1.msra.mxu0 0.0
  %91 = vmatprep.subr.mxu0 0.0
  %92 = vmatpush1.msra.mxu0 0.0
  %93 = vmatprep.subr.mxu0 0.0
  %94 = vmatpush1.msra.mxu0 0.0
  %95 = vmatprep.subr.mxu0 0.0
  %96 = vmatpush1.msra.mxu0 0.0
  %97 = vmatprep.subr.mxu0 0.0
  %98 = vmatpush1.msra.mxu0 0.0
  %99 = vmatprep.subr.mxu0 0.0
  %100 = vmatpush1.msra.mxu0 0.0
  %101 = vmatprep.subr.mxu0 0.0
  %102 = vmatpush1.msra.mxu0 0.0
  %103 = vmatprep.subr.mxu0 0.0
  %104 = vmatpush1.msra.mxu0 0.0
  %105 = vmatprep.subr.mxu0 0.0
  %106 = vmatpush1.msra.mxu0 0.0
  %107 = vmatprep.subr.mxu0 0.0
  %108 = vmatpush1.msra.mxu0 0.0
  %109 = vmatprep.subr.mxu0 0.0
  %110 = vmatpush1.msra.mxu0 0.0
  %111 = vmatprep.subr.mxu0 0.0
  %112 = vmatpush1.msra.mxu0 0.0
  %113 = vmatprep.subr.mxu0 0.0
  %114 = vmatpush1.msra.mxu0 0.0
  %115 = vmatprep.subr.mxu0 0.0
  %116 = vmatpush1.msra.mxu0 0.0
  %117 = vmatprep.subr.mxu0 0.0
  %118 = vmatpush1.msra.mxu0 0.0
  %119 = vmatprep.subr.mxu0 0.0
  %120 = vmatpush1.msra.mxu0 0.0
  %121 = vmatprep.subr.mxu0 0.0
  %122 = vmatpush1.msra.mxu0 0.0
  %123 = vmatprep.subr.mxu0 0.0
  %124 = vmatpush1.msra.mxu0 0.0
  %125 = vmatprep.subr.mxu0 0.0
  %126 = vmatpush1.msra.mxu0 0.0
  %127 = vmatprep.subr.mxu0 0.0
  %128 = vmatpush1.msra.mxu0 0.0
  %129 = vmatprep.subr.mxu0 0.0
  %130 = vmatpush1.msra.mxu0 0.0
  %131 = vmatprep.subr.mxu0 0.0
  %132 = vmatpush1.msra.mxu0 0.0
  %133 = vmatprep.subr.mxu0 0.0
  %134 = vmatpush1.msra.mxu0 0.0
  %135 = vmatprep.subr.mxu0 0.0
  %136 = vmatpush1.msra.mxu0 0.0
  %137 = vmatprep.subr.mxu0 0.0
  %138 = vmatpush1.msra.mxu0 0.0
  %139 = vmatprep.subr.mxu0 0.0
  %140 = vmatpush1.msra.mxu0 0.0
  %141 = vmatprep.subr.mxu0 0.0
  %142 = vmatpush1.msra.mxu0 0.0
  %143 = vmatprep.subr.mxu0 0.0
  %144 = vmatpush1.msra.mxu0 0.0
  %145 = vmatprep.subr.mxu0 0.0
  %146 = vmatpush1.msra.mxu0 0.0
  %147 = vmatprep.mubr.f32.mxu0 0.0
  %148 = vmatmul.mubr.f32.gmra.mrb[0].mxu0 %v56
  %v149 = vpop.f32.mrb[0].mxu0
  %v150 = vadd.f32 %v52, %v149
  %v151 = vpop.f32.mrb[0].mxu0
  %152 = vmatprep.mubr.f32.mxu0 0.0
  %153 = vmatmul.mubr.f32.gmra.mrb[0].mxu0 %v59
  %v154 = vpop.f32.mrb[0].mxu0
  %v155 = vadd.f32 %v52, %v154
  %v156 = vpop.f32.mrb[0].mxu0
  %157 = vmatprep.mubr.f32.mxu0 0.0
  %158 = vmatmul.mubr.f32.gmra.mrb[0].mxu0 %v62
  %v159 = vpop.f32.mrb[0].mxu0
  %v160 = vadd.f32 %v52, %v159
  %v161 = vpop.f32.mrb[0].mxu0
  %162 = vmatprep.mubr.f32.mxu0 0.0
  %163 = vmatmul.mubr.f32.gmra.mrb[0].mxu0 %v65
  %v164 = vpop.f32.mrb[0].mxu0
  %v165 = vadd.f32 %v52, %v164
  %v166 = vpop.f32.mrb[0].mxu0
  %167 = vmatprep.mubr.f32.mxu0 0.0
  %168 = vmatmul.mubr.f32.gmra.mrb[0].mxu0 %v68
  %v169 = vpop.f32.mrb[0].mxu0
  %v170 = vadd.f32 %v52, %v169
  %v171 = vpop.f32.mrb[0].mxu0
  %172 = vmatprep.mubr.f32.mxu0 0.0
  %173 = vmatmul.mubr.f32.gmra.mrb[0].mxu0 %v71
  %v174 = vpop.f32.mrb[0].mxu0
  %v175 = vadd.f32 %v52, %v174
  %v176 = vpop.f32.mrb[0].mxu0
  %177 = vmatprep.mubr.f32.mxu0 0.0
  %178 = vmatmul.mubr.f32.gmra.mrb[0].mxu0 %v74
  %v179 = vpop.f32.mrb[0].mxu0
  %v180 = vadd.f32 %v52, %v179
  %v181 = vpop.f32.mrb[0].mxu0
  %182 = vmatprep.mubr.f32.mxu0 0.0
  %183 = vmatmul.mubr.f32.gmra.mrb[0].mxu0 %v77
  %v184 = vpop.f32.mrb[0].mxu0
  %v185 = vadd.f32 %v52, %v184
  %v186 = vpop.f32.mrb[0].mxu0
  %187 = vdwg.mxu0
  %vm188 = vcmask 261120
  %v190 = vsel %vm188, 0.0, 0
  %192 = vmatprep.subr.mxu0 0.0
  %193 = vmatpush1.msra.mxu0 %v35
  %194 = vmatprep.subr.mxu0 0.0
  %195 = vmatpush1.msra.mxu0 %v36
  %196 = vmatprep.subr.mxu0 0.0
  %197 = vmatpush1.msra.mxu0 %v37
  %198 = vmatprep.subr.mxu0 0.0
  %199 = vmatpush1.msra.mxu0 %v38
  %200 = vmatprep.subr.mxu0 0.0
  %201 = vmatpush1.msra.mxu0 0.0
  %202 = vmatprep.subr.mxu0 0.0
  %203 = vmatpush1.msra.mxu0 0.0
  %204 = vmatprep.subr.mxu0 0.0
  %205 = vmatpush1.msra.mxu0 0.0
  %206 = vmatprep.subr.mxu0 0.0
  %207 = vmatpush1.msra.mxu0 0.0
  %208 = vmatprep.subr.mxu0 0.0
  %209 = vmatpush1.msra.mxu0 0.0
  %210 = vmatprep.subr.mxu0 0.0
  %211 = vmatpush1.msra.mxu0 0.0
  %212 = vmatprep.subr.mxu0 0.0
  %213 = vmatpush1.msra.mxu0 0.0
  %214 = vmatprep.subr.mxu0 0.0
  %215 = vmatpush1.msra.mxu0 0.0
  %216 = vmatprep.subr.mxu0 0.0
  %217 = vmatpush1.msra.mxu0 0.0
  %218 = vmatprep.subr.mxu0 0.0
  %219 = vmatpush1.msra.mxu0 0.0
  %220 = vmatprep.subr.mxu0 0.0
  %221 = vmatpush1.msra.mxu0 0.0
  %222 = vmatprep.subr.mxu0 0.0
  %223 = vmatpush1.msra.mxu0 0.0
  %224 = vmatprep.subr.mxu0 0.0
  %225 = vmatpush1.msra.mxu0 0.0
  %226 = vmatprep.subr.mxu0 0.0
  %227 = vmatpush1.msra.mxu0 0.0
  %228 = vmatprep.subr.mxu0 0.0
  %229 = vmatpush1.msra.mxu0 0.0
  %230 = vmatprep.subr.mxu0 0.0
  %231 = vmatpush1.msra.mxu0 0.0
  %232 = vmatprep.subr.mxu0 0.0
  %233 = vmatpush1.msra.mxu0 0.0
  %234 = vmatprep.subr.mxu0 0.0
  %235 = vmatpush1.msra.mxu0 0.0
  %236 = vmatprep.subr.mxu0 0.0
  %237 = vmatpush1.msra.mxu0 0.0
  %238 = vmatprep.subr.mxu0 0.0
  %239 = vmatpush1.msra.mxu0 0.0
  %240 = vmatprep.subr.mxu0 0.0
  %241 = vmatpush1.msra.mxu0 0.0
  %242 = vmatprep.subr.mxu0 0.0
  %243 = vmatpush1.msra.mxu0 0.0
  %244 = vmatprep.subr.mxu0 0.0
  %245 = vmatpush1.msra.mxu0 0.0
  %246 = vmatprep.subr.mxu0 0.0
  %247 = vmatpush1.msra.mxu0 0.0
  %248 = vmatprep.subr.mxu0 0.0
  %249 = vmatpush1.msra.mxu0 0.0
  %250 = vmatprep.subr.mxu0 0.0
  %251 = vmatpush1.msra.mxu0 0.0
  %252 = vmatprep.subr.mxu0 0.0
  %253 = vmatpush1.msra.mxu0 0.0
  %254 = vmatprep.subr.mxu0 0.0
  %255 = vmatpush1.msra.mxu0 0.0
  %256 = vmatprep.mubr.f32.mxu0 0.0
  %257 = vmatmul.mubr.f32.gmra.mrb[0].mxu0 %v190
  %v258 = vpop.f32.mrb[0].mxu0
  %v259 = vadd.f32 0.0, %v258
  %v260 = vpop.f32.mrb[0].mxu0
  %261 = vdwg.mxu0
  %v262 = vadd.f32 %v150, %v259
  %v263 = vxor.u32 %v262, 2147483648
  %v264 = vmul.f32 %v263, 1.442695
  %v265 = vpow.pop %v264
  %v266 = vadd.f32 %v265, 1.0
  %v267 = vrcp.pop %v266
  %v268 = vmul.f32 1.0, %v267
  %v269 = vtanh.pop %v262
  %v270 = vmul.f32 %v268, 0.0
  %272 = vrot.lane.b32.xlu0 %v269, 32
  %v273 = vpop.permute.xlu0 %272
  %v275 = vmul.f32 %v268, %v273
  %277 = vrot.lane.b32.xlu0 %v275, 32
  %v278 = vpop.permute.xlu0 %277
  %v280 = vadd.f32 %v270, %v278
  %v281 = vtanh.pop %v280
  %283 = vrot.lane.b32.xlu0 %v281, 32
  %v284 = vpop.permute.xlu0 %283
  %v286 = vmul.f32 %v268, %v284
  %288 = vrot.lane.b32.xlu0 %v286, 64
  %v289 = vpop.permute.xlu0 %288
  %291 = vst.msk [vmem:[#allocation2] sm:$0xff] %vm188, %v289
  %v292 = vsel %vm188, %v289, 0
  %294 = vmatprep.subr.mxu0 0.0
  %295 = vmatpush1.msra.mxu0 %v35
  %296 = vmatprep.subr.mxu0 0.0
  %297 = vmatpush1.msra.mxu0 %v36
  %298 = vmatprep.subr.mxu0 0.0
  %299 = vmatpush1.msra.mxu0 %v37
  %300 = vmatprep.subr.mxu0 0.0
  %301 = vmatpush1.msra.mxu0 %v38
  %302 = vmatprep.subr.mxu0 0.0
  %303 = vmatpush1.msra.mxu0 0.0
  %304 = vmatprep.subr.mxu0 0.0
  %305 = vmatpush1.msra.mxu0 0.0
  %306 = vmatprep.subr.mxu0 0.0
  %307 = vmatpush1.msra.mxu0 0.0
  %308 = vmatprep.subr.mxu0 0.0
  %309 = vmatpush1.msra.mxu0 0.0
  %310 = vmatprep.subr.mxu0 0.0
  %311 = vmatpush1.msra.mxu0 0.0
  %312 = vmatprep.subr.mxu0 0.0
  %313 = vmatpush1.msra.mxu0 0.0
  %314 = vmatprep.subr.mxu0 0.0
  %315 = vmatpush1.msra.mxu0 0.0
  %316 = vmatprep.subr.mxu0 0.0
  %317 = vmatpush1.msra.mxu0 0.0
  %318 = vmatprep.subr.mxu0 0.0
  %319 = vmatpush1.msra.mxu0 0.0
  %320 = vmatprep.subr.mxu0 0.0
  %321 = vmatpush1.msra.mxu0 0.0
  %322 = vmatprep.subr.mxu0 0.0
  %323 = vmatpush1.msra.mxu0 0.0
  %324 = vmatprep.subr.mxu0 0.0
  %325 = vmatpush1.msra.mxu0 0.0
  %326 = vmatprep.subr.mxu0 0.0
  %327 = vmatpush1.msra.mxu0 0.0
  %328 = vmatprep.subr.mxu0 0.0
  %329 = vmatpush1.msra.mxu0 0.0
  %330 = vmatprep.subr.mxu0 0.0
  %331 = vmatpush1.msra.mxu0 0.0
  %332 = vmatprep.subr.mxu0 0.0
  %333 = vmatpush1.msra.mxu0 0.0
  %334 = vmatprep.subr.mxu0 0.0
  %335 = vmatpush1.msra.mxu0 0.0
  %336 = vmatprep.subr.mxu0 0.0
  %337 = vmatpush1.msra.mxu0 0.0
  %338 = vmatprep.subr.mxu0 0.0
  %339 = vmatpush1.msra.mxu0 0.0
  %340 = vmatprep.subr.mxu0 0.0
  %341 = vmatpush1.msra.mxu0 0.0
  %342 = vmatprep.subr.mxu0 0.0
  %343 = vmatpush1.msra.mxu0 0.0
  %344 = vmatprep.subr.mxu0 0.0
  %345 = vmatpush1.msra.mxu0 0.0
  %346 = vmatprep.subr.mxu0 0.0
  %347 = vmatpush1.msra.mxu0 0.0
  %348 = vmatprep.subr.mxu0 0.0
  %349 = vmatpush1.msra.mxu0 0.0
  %350 = vmatprep.subr.mxu0 0.0
  %351 = vmatpush1.msra.mxu0 0.0
  %352 = vmatprep.subr.mxu0 0.0
  %353 = vmatpush1.msra.mxu0 0.0
  %354 = vmatprep.subr.mxu0 0.0
  %355 = vmatpush1.msra.mxu0 0.0
  %356 = vmatprep.subr.mxu0 0.0
  %357 = vmatpush1.msra.mxu0 0.0
  %358 = vmatprep.mubr.f32.mxu0 0.0
  %359 = vmatmul.mubr.f32.gmra.mrb[0].mxu0 %v292
  %v360 = vpop.f32.mrb[0].mxu0
  %v361 = vadd.f32 0.0, %v360
  %v362 = vpop.f32.mrb[0].mxu0
  %363 = vdwg.mxu0
  %v364 = vadd.f32 %v155, %v361
  %v365 = vxor.u32 %v364, 2147483648
  %v366 = vmul.f32 %v365, 1.442695
  %v367 = vpow.pop %v366
  %v368 = vadd.f32 %v367, 1.0
  %v369 = vrcp.pop %v368
  %v370 = vmul.f32 1.0, %v369
  %v371 = vtanh.pop %v364
  %v372 = vmul.f32 %v370, %v280
  %374 = vrot.lane.b32.xlu0 %v371, 32
  %v375 = vpop.permute.xlu0 %374
  %v377 = vmul.f32 %v370, %v375
  %379 = vrot.lane.b32.xlu0 %v377, 32
  %v380 = vpop.permute.xlu0 %379
  %v382 = vadd.f32 %v372, %v380
  %v383 = vtanh.pop %v382
  %385 = vrot.lane.b32.xlu0 %v383, 32
  %v386 = vpop.permute.xlu0 %385
  %v388 = vmul.f32 %v370, %v386
  %390 = vrot.lane.b32.xlu0 %v388, 64
  %v391 = vpop.permute.xlu0 %390
  %s393 = scalar_lea.vmem [#allocation2], 8
  %394 = vst.msk [vmem:[%s393] sm:$0xff] %vm188, %v391
  %v395 = vsel %vm188, %v391, 0
  %397 = vmatprep.subr.mxu0 0.0
  %398 = vmatpush1.msra.mxu0 %v35
  %399 = vmatprep.subr.mxu0 0.0
  %400 = vmatpush1.msra.mxu0 %v36
  %401 = vmatprep.subr.mxu0 0.0
  %402 = vmatpush1.msra.mxu0 %v37
  %403 = vmatprep.subr.mxu0 0.0
  %404 = vmatpush1.msra.mxu0 %v38
  %405 = vmatprep.subr.mxu0 0.0
  %406 = vmatpush1.msra.mxu0 0.0
  %407 = vmatprep.subr.mxu0 0.0
  %408 = vmatpush1.msra.mxu0 0.0
  %409 = vmatprep.subr.mxu0 0.0
  %410 = vmatpush1.msra.mxu0 0.0
  %411 = vmatprep.subr.mxu0 0.0
  %412 = vmatpush1.msra.mxu0 0.0
  %413 = vmatprep.subr.mxu0 0.0
  %414 = vmatpush1.msra.mxu0 0.0
  %415 = vmatprep.subr.mxu0 0.0
  %416 = vmatpush1.msra.mxu0 0.0
  %417 = vmatprep.subr.mxu0 0.0
  %418 = vmatpush1.msra.mxu0 0.0
  %419 = vmatprep.subr.mxu0 0.0
  %420 = vmatpush1.msra.mxu0 0.0
  %421 = vmatprep.subr.mxu0 0.0
  %422 = vmatpush1.msra.mxu0 0.0
  %423 = vmatprep.subr.mxu0 0.0
  %424 = vmatpush1.msra.mxu0 0.0
  %425 = vmatprep.subr.mxu0 0.0
  %426 = vmatpush1.msra.mxu0 0.0
  %427 = vmatprep.subr.mxu0 0.0
  %428 = vmatpush1.msra.mxu0 0.0
  %429 = vmatprep.subr.mxu0 0.0
  %430 = vmatpush1.msra.mxu0 0.0
  %431 = vmatprep.subr.mxu0 0.0
  %432 = vmatpush1.msra.mxu0 0.0
  %433 = vmatprep.subr.mxu0 0.0
  %434 = vmatpush1.msra.mxu0 0.0
  %435 = vmatprep.subr.mxu0 0.0
  %436 = vmatpush1.msra.mxu0 0.0
  %437 = vmatprep.subr.mxu0 0.0
  %438 = vmatpush1.msra.mxu0 0.0
  %439 = vmatprep.subr.mxu0 0.0
  %440 = vmatpush1.msra.mxu0 0.0
  %441 = vmatprep.subr.mxu0 0.0
  %442 = vmatpush1.msra.mxu0 0.0
  %443 = vmatprep.subr.mxu0 0.0
  %444 = vmatpush1.msra.mxu0 0.0
  %445 = vmatprep.subr.mxu0 0.0
  %446 = vmatpush1.msra.mxu0 0.0
  %447 = vmatprep.subr.mxu0 0.0
  %448 = vmatpush1.msra.mxu0 0.0
  %449 = vmatprep.subr.mxu0 0.0
  %450 = vmatpush1.msra.mxu0 0.0
  %451 = vmatprep.subr.mxu0 0.0
  %452 = vmatpush1.msra.mxu0 0.0
  %453 = vmatprep.subr.mxu0 0.0
  %454 = vmatpush1.msra.mxu0 0.0
  %455 = vmatprep.subr.mxu0 0.0
  %456 = vmatpush1.msra.mxu0 0.0
  %457 = vmatprep.subr.mxu0 0.0
  %458 = vmatpush1.msra.mxu0 0.0
  %459 = vmatprep.subr.mxu0 0.0
  %460 = vmatpush1.msra.mxu0 0.0
  %461 = vmatprep.mubr.f32.mxu0 0.0
  %462 = vmatmul.mubr.f32.gmra.mrb[0].mxu0 %v395
  %v463 = vpop.f32.mrb[0].mxu0
  %v464 = vadd.f32 0.0, %v463
  %v465 = vpop.f32.mrb[0].mxu0
  %466 = vdwg.mxu0
  %v467 = vadd.f32 %v160, %v464
  %v468 = vxor.u32 %v467, 2147483648
  %v469 = vmul.f32 %v468, 1.442695
  %v470 = vpow.pop %v469
  %v471 = vadd.f32 %v470, 1.0
  %v472 = vrcp.pop %v471
  %v473 = vmul.f32 1.0, %v472
  %v474 = vtanh.pop %v467
  %v475 = vmul.f32 %v473, %v382
  %477 = vrot.lane.b32.xlu0 %v474, 32
  %v478 = vpop.permute.xlu0 %477
  %v480 = vmul.f32 %v473, %v478
  %482 = vrot.lane.b32.xlu0 %v480, 32
  %v483 = vpop.permute.xlu0 %482
  %v485 = vadd.f32 %v475, %v483
  %v486 = vtanh.pop %v485
  %488 = vrot.lane.b32.xlu0 %v486, 32
  %v489 = vpop.permute.xlu0 %488
  %v491 = vmul.f32 %v473, %v489
  %493 = vrot.lane.b32.xlu0 %v491, 64
  %v494 = vpop.permute.xlu0 %493
  %s496 = scalar_lea.vmem [#allocation2], 16
  %497 = vst.msk [vmem:[%s496] sm:$0xff] %vm188, %v494
  %v498 = vsel %vm188, %v494, 0
  %500 = vmatprep.subr.mxu0 0.0
  %501 = vmatpush1.msra.mxu0 %v35
  %502 = vmatprep.subr.mxu0 0.0
  %503 = vmatpush1.msra.mxu0 %v36
  %504 = vmatprep.subr.mxu0 0.0
  %505 = vmatpush1.msra.mxu0 %v37
  %506 = vmatprep.subr.mxu0 0.0
  %507 = vmatpush1.msra.mxu0 %v38
  %508 = vmatprep.subr.mxu0 0.0
  %509 = vmatpush1.msra.mxu0 0.0
  %510 = vmatprep.subr.mxu0 0.0
  %511 = vmatpush1.msra.mxu0 0.0
  %512 = vmatprep.subr.mxu0 0.0
  %513 = vmatpush1.msra.mxu0 0.0
  %514 = vmatprep.subr.mxu0 0.0
  %515 = vmatpush1.msra.mxu0 0.0
  %516 = vmatprep.subr.mxu0 0.0
  %517 = vmatpush1.msra.mxu0 0.0
  %518 = vmatprep.subr.mxu0 0.0
  %519 = vmatpush1.msra.mxu0 0.0
  %520 = vmatprep.subr.mxu0 0.0
  %521 = vmatpush1.msra.mxu0 0.0
  %522 = vmatprep.subr.mxu0 0.0
  %523 = vmatpush1.msra.mxu0 0.0
  %524 = vmatprep.subr.mxu0 0.0
  %525 = vmatpush1.msra.mxu0 0.0
  %526 = vmatprep.subr.mxu0 0.0
  %527 = vmatpush1.msra.mxu0 0.0
  %528 = vmatprep.subr.mxu0 0.0
  %529 = vmatpush1.msra.mxu0 0.0
  %530 = vmatprep.subr.mxu0 0.0
  %531 = vmatpush1.msra.mxu0 0.0
  %532 = vmatprep.subr.mxu0 0.0
  %533 = vmatpush1.msra.mxu0 0.0
  %534 = vmatprep.subr.mxu0 0.0
  %535 = vmatpush1.msra.mxu0 0.0
  %536 = vmatprep.subr.mxu0 0.0
  %537 = vmatpush1.msra.mxu0 0.0
  %538 = vmatprep.subr.mxu0 0.0
  %539 = vmatpush1.msra.mxu0 0.0
  %540 = vmatprep.subr.mxu0 0.0
  %541 = vmatpush1.msra.mxu0 0.0
  %542 = vmatprep.subr.mxu0 0.0
  %543 = vmatpush1.msra.mxu0 0.0
  %544 = vmatprep.subr.mxu0 0.0
  %545 = vmatpush1.msra.mxu0 0.0
  %546 = vmatprep.subr.mxu0 0.0
  %547 = vmatpush1.msra.mxu0 0.0
  %548 = vmatprep.subr.mxu0 0.0
  %549 = vmatpush1.msra.mxu0 0.0
  %550 = vmatprep.subr.mxu0 0.0
  %551 = vmatpush1.msra.mxu0 0.0
  %552 = vmatprep.subr.mxu0 0.0
  %553 = vmatpush1.msra.mxu0 0.0
  %554 = vmatprep.subr.mxu0 0.0
  %555 = vmatpush1.msra.mxu0 0.0
  %556 = vmatprep.subr.mxu0 0.0
  %557 = vmatpush1.msra.mxu0 0.0
  %558 = vmatprep.subr.mxu0 0.0
  %559 = vmatpush1.msra.mxu0 0.0
  %560 = vmatprep.subr.mxu0 0.0
  %561 = vmatpush1.msra.mxu0 0.0
  %562 = vmatprep.subr.mxu0 0.0
  %563 = vmatpush1.msra.mxu0 0.0
  %564 = vmatprep.mubr.f32.mxu0 0.0
  %565 = vmatmul.mubr.f32.gmra.mrb[0].mxu0 %v498
  %v566 = vpop.f32.mrb[0].mxu0
  %v567 = vadd.f32 0.0, %v566
  %v568 = vpop.f32.mrb[0].mxu0
  %569 = vdwg.mxu0
  %v570 = vadd.f32 %v165, %v567
  %v571 = vxor.u32 %v570, 2147483648
  %v572 = vmul.f32 %v571, 1.442695
  %v573 = vpow.pop %v572
  %v574 = vadd.f32 %v573, 1.0
  %v575 = vrcp.pop %v574
  %v576 = vmul.f32 1.0, %v575
  %v577 = vtanh.pop %v570
  %v578 = vmul.f32 %v576, %v485
  %580 = vrot.lane.b32.xlu0 %v577, 32
  %v581 = vpop.permute.xlu0 %580
  %v583 = vmul.f32 %v576, %v581
  %585 = vrot.lane.b32.xlu0 %v583, 32
  %v586 = vpop.permute.xlu0 %585
  %v588 = vadd.f32 %v578, %v586
  %v589 = vtanh.pop %v588
  %591 = vrot.lane.b32.xlu0 %v589, 32
  %v592 = vpop.permute.xlu0 %591
  %v594 = vmul.f32 %v576, %v592
  %596 = vrot.lane.b32.xlu0 %v594, 64
  %v597 = vpop.permute.xlu0 %596
  %s599 = scalar_lea.vmem [#allocation2], 24
  %600 = vst.msk [vmem:[%s599] sm:$0xff] %vm188, %v597
  %v601 = vsel %vm188, %v597, 0
  %603 = vmatprep.subr.mxu0 0.0
  %604 = vmatpush1.msra.mxu0 %v35
  %605 = vmatprep.subr.mxu0 0.0
  %606 = vmatpush1.msra.mxu0 %v36
  %607 = vmatprep.subr.mxu0 0.0
  %608 = vmatpush1.msra.mxu0 %v37
  %609 = vmatprep.subr.mxu0 0.0
  %610 = vmatpush1.msra.mxu0 %v38
  %611 = vmatprep.subr.mxu0 0.0
  %612 = vmatpush1.msra.mxu0 0.0
  %613 = vmatprep.subr.mxu0 0.0
  %614 = vmatpush1.msra.mxu0 0.0
  %615 = vmatprep.subr.mxu0 0.0
  %616 = vmatpush1.msra.mxu0 0.0
  %617 = vmatprep.subr.mxu0 0.0
  %618 = vmatpush1.msra.mxu0 0.0
  %619 = vmatprep.subr.mxu0 0.0
  %620 = vmatpush1.msra.mxu0 0.0
  %621 = vmatprep.subr.mxu0 0.0
  %622 = vmatpush1.msra.mxu0 0.0
  %623 = vmatprep.subr.mxu0 0.0
  %624 = vmatpush1.msra.mxu0 0.0
  %625 = vmatprep.subr.mxu0 0.0
  %626 = vmatpush1.msra.mxu0 0.0
  %627 = vmatprep.subr.mxu0 0.0
  %628 = vmatpush1.msra.mxu0 0.0
  %629 = vmatprep.subr.mxu0 0.0
  %630 = vmatpush1.msra.mxu0 0.0
  %631 = vmatprep.subr.mxu0 0.0
  %632 = vmatpush1.msra.mxu0 0.0
  %633 = vmatprep.subr.mxu0 0.0
  %634 = vmatpush1.msra.mxu0 0.0
  %635 = vmatprep.subr.mxu0 0.0
  %636 = vmatpush1.msra.mxu0 0.0
  %637 = vmatprep.subr.mxu0 0.0
  %638 = vmatpush1.msra.mxu0 0.0
  %639 = vmatprep.subr.mxu0 0.0
  %640 = vmatpush1.msra.mxu0 0.0
  %641 = vmatprep.subr.mxu0 0.0
  %642 = vmatpush1.msra.mxu0 0.0
  %643 = vmatprep.subr.mxu0 0.0
  %644 = vmatpush1.msra.mxu0 0.0
  %645 = vmatprep.subr.mxu0 0.0
  %646 = vmatpush1.msra.mxu0 0.0
  %647 = vmatprep.subr.mxu0 0.0
  %648 = vmatpush1.msra.mxu0 0.0
  %649 = vmatprep.subr.mxu0 0.0
  %650 = vmatpush1.msra.mxu0 0.0
  %651 = vmatprep.subr.mxu0 0.0
  %652 = vmatpush1.msra.mxu0 0.0
  %653 = vmatprep.subr.mxu0 0.0
  %654 = vmatpush1.msra.mxu0 0.0
  %655 = vmatprep.subr.mxu0 0.0
  %656 = vmatpush1.msra.mxu0 0.0
  %657 = vmatprep.subr.mxu0 0.0
  %658 = vmatpush1.msra.mxu0 0.0
  %659 = vmatprep.subr.mxu0 0.0
  %660 = vmatpush1.msra.mxu0 0.0
  %661 = vmatprep.subr.mxu0 0.0
  %662 = vmatpush1.msra.mxu0 0.0
  %663 = vmatprep.subr.mxu0 0.0
  %664 = vmatpush1.msra.mxu0 0.0
  %665 = vmatprep.subr.mxu0 0.0
  %666 = vmatpush1.msra.mxu0 0.0
  %667 = vmatprep.mubr.f32.mxu0 0.0
  %668 = vmatmul.mubr.f32.gmra.mrb[0].mxu0 %v601
  %v669 = vpop.f32.mrb[0].mxu0
  %v670 = vadd.f32 0.0, %v669
  %v671 = vpop.f32.mrb[0].mxu0
  %672 = vdwg.mxu0
  %v673 = vadd.f32 %v170, %v670
  %v674 = vxor.u32 %v673, 2147483648
  %v675 = vmul.f32 %v674, 1.442695
  %v676 = vpow.pop %v675
  %v677 = vadd.f32 %v676, 1.0
  %v678 = vrcp.pop %v677
  %v679 = vmul.f32 1.0, %v678
  %v680 = vtanh.pop %v673
  %v681 = vmul.f32 %v679, %v588
  %683 = vrot.lane.b32.xlu0 %v680, 32
  %v684 = vpop.permute.xlu0 %683
  %v686 = vmul.f32 %v679, %v684
  %688 = vrot.lane.b32.xlu0 %v686, 32
  %v689 = vpop.permute.xlu0 %688
  %v691 = vadd.f32 %v681, %v689
  %v692 = vtanh.pop %v691
  %694 = vrot.lane.b32.xlu0 %v692, 32
  %v695 = vpop.permute.xlu0 %694
  %v697 = vmul.f32 %v679, %v695
  %699 = vrot.lane.b32.xlu0 %v697, 64
  %v700 = vpop.permute.xlu0 %699
  %s702 = scalar_lea.vmem [#allocation2], 32
  %703 = vst.msk [vmem:[%s702] sm:$0xff] %vm188, %v700
  %v704 = vsel %vm188, %v700, 0
  %706 = vmatprep.subr.mxu0 0.0
  %707 = vmatpush1.msra.mxu0 %v35
  %708 = vmatprep.subr.mxu0 0.0
  %709 = vmatpush1.msra.mxu0 %v36
  %710 = vmatprep.subr.mxu0 0.0
  %711 = vmatpush1.msra.mxu0 %v37
  %712 = vmatprep.subr.mxu0 0.0
  %713 = vmatpush1.msra.mxu0 %v38
  %714 = vmatprep.subr.mxu0 0.0
  %715 = vmatpush1.msra.mxu0 0.0
  %716 = vmatprep.subr.mxu0 0.0
  %717 = vmatpush1.msra.mxu0 0.0
  %718 = vmatprep.subr.mxu0 0.0
  %719 = vmatpush1.msra.mxu0 0.0
  %720 = vmatprep.subr.mxu0 0.0
  %721 = vmatpush1.msra.mxu0 0.0
  %722 = vmatprep.subr.mxu0 0.0
  %723 = vmatpush1.msra.mxu0 0.0
  %724 = vmatprep.subr.mxu0 0.0
  %725 = vmatpush1.msra.mxu0 0.0
  %726 = vmatprep.subr.mxu0 0.0
  %727 = vmatpush1.msra.mxu0 0.0
  %728 = vmatprep.subr.mxu0 0.0
  %729 = vmatpush1.msra.mxu0 0.0
  %730 = vmatprep.subr.mxu0 0.0
  %731 = vmatpush1.msra.mxu0 0.0
  %732 = vmatprep.subr.mxu0 0.0
  %733 = vmatpush1.msra.mxu0 0.0
  %734 = vmatprep.subr.mxu0 0.0
  %735 = vmatpush1.msra.mxu0 0.0
  %736 = vmatprep.subr.mxu0 0.0
  %737 = vmatpush1.msra.mxu0 0.0
  %738 = vmatprep.subr.mxu0 0.0
  %739 = vmatpush1.msra.mxu0 0.0
  %740 = vmatprep.subr.mxu0 0.0
  %741 = vmatpush1.msra.mxu0 0.0
  %742 = vmatprep.subr.mxu0 0.0
  %743 = vmatpush1.msra.mxu0 0.0
  %744 = vmatprep.subr.mxu0 0.0
  %745 = vmatpush1.msra.mxu0 0.0
  %746 = vmatprep.subr.mxu0 0.0
  %747 = vmatpush1.msra.mxu0 0.0
  %748 = vmatprep.subr.mxu0 0.0
  %749 = vmatpush1.msra.mxu0 0.0
  %750 = vmatprep.subr.mxu0 0.0
  %751 = vmatpush1.msra.mxu0 0.0
  %752 = vmatprep.subr.mxu0 0.0
  %753 = vmatpush1.msra.mxu0 0.0
  %754 = vmatprep.subr.mxu0 0.0
  %755 = vmatpush1.msra.mxu0 0.0
  %756 = vmatprep.subr.mxu0 0.0
  %757 = vmatpush1.msra.mxu0 0.0
  %758 = vmatprep.subr.mxu0 0.0
  %759 = vmatpush1.msra.mxu0 0.0
  %760 = vmatprep.subr.mxu0 0.0
  %761 = vmatpush1.msra.mxu0 0.0
  %762 = vmatprep.subr.mxu0 0.0
  %763 = vmatpush1.msra.mxu0 0.0
  %764 = vmatprep.subr.mxu0 0.0
  %765 = vmatpush1.msra.mxu0 0.0
  %766 = vmatprep.subr.mxu0 0.0
  %767 = vmatpush1.msra.mxu0 0.0
  %768 = vmatprep.subr.mxu0 0.0
  %769 = vmatpush1.msra.mxu0 0.0
  %770 = vmatprep.mubr.f32.mxu0 0.0
  %771 = vmatmul.mubr.f32.gmra.mrb[0].mxu0 %v704
  %v772 = vpop.f32.mrb[0].mxu0
  %v773 = vadd.f32 0.0, %v772
  %v774 = vpop.f32.mrb[0].mxu0
  %775 = vdwg.mxu0
  %v776 = vadd.f32 %v175, %v773
  %v777 = vxor.u32 %v776, 2147483648
  %v778 = vmul.f32 %v777, 1.442695
  %v779 = vpow.pop %v778
  %v780 = vadd.f32 %v779, 1.0
  %v781 = vrcp.pop %v780
  %v782 = vmul.f32 1.0, %v781
  %v783 = vtanh.pop %v776
  %v784 = vmul.f32 %v782, %v691
  %786 = vrot.lane.b32.xlu0 %v783, 32
  %v787 = vpop.permute.xlu0 %786
  %v789 = vmul.f32 %v782, %v787
  %791 = vrot.lane.b32.xlu0 %v789, 32
  %v792 = vpop.permute.xlu0 %791
  %v794 = vadd.f32 %v784, %v792
  %v795 = vtanh.pop %v794
  %797 = vrot.lane.b32.xlu0 %v795, 32
  %v798 = vpop.permute.xlu0 %797
  %v800 = vmul.f32 %v782, %v798
  %802 = vrot.lane.b32.xlu0 %v800, 64
  %v803 = vpop.permute.xlu0 %802
  %s805 = scalar_lea.vmem [#allocation2], 40
  %806 = vst.msk [vmem:[%s805] sm:$0xff] %vm188, %v803
  %v807 = vsel %vm188, %v803, 0
  %809 = vmatprep.subr.mxu0 0.0
  %810 = vmatpush1.msra.mxu0 %v35
  %811 = vmatprep.subr.mxu0 0.0
  %812 = vmatpush1.msra.mxu0 %v36
  %813 = vmatprep.subr.mxu0 0.0
  %814 = vmatpush1.msra.mxu0 %v37
  %815 = vmatprep.subr.mxu0 0.0
  %816 = vmatpush1.msra.mxu0 %v38
  %817 = vmatprep.subr.mxu0 0.0
  %818 = vmatpush1.msra.mxu0 0.0
  %819 = vmatprep.subr.mxu0 0.0
  %820 = vmatpush1.msra.mxu0 0.0
  %821 = vmatprep.subr.mxu0 0.0
  %822 = vmatpush1.msra.mxu0 0.0
  %823 = vmatprep.subr.mxu0 0.0
  %824 = vmatpush1.msra.mxu0 0.0
  %825 = vmatprep.subr.mxu0 0.0
  %826 = vmatpush1.msra.mxu0 0.0
  %827 = vmatprep.subr.mxu0 0.0
  %828 = vmatpush1.msra.mxu0 0.0
  %829 = vmatprep.subr.mxu0 0.0
  %830 = vmatpush1.msra.mxu0 0.0
  %831 = vmatprep.subr.mxu0 0.0
  %832 = vmatpush1.msra.mxu0 0.0
  %833 = vmatprep.subr.mxu0 0.0
  %834 = vmatpush1.msra.mxu0 0.0
  %835 = vmatprep.subr.mxu0 0.0
  %836 = vmatpush1.msra.mxu0 0.0
  %837 = vmatprep.subr.mxu0 0.0
  %838 = vmatpush1.msra.mxu0 0.0
  %839 = vmatprep.subr.mxu0 0.0
  %840 = vmatpush1.msra.mxu0 0.0
  %841 = vmatprep.subr.mxu0 0.0
  %842 = vmatpush1.msra.mxu0 0.0
  %843 = vmatprep.subr.mxu0 0.0
  %844 = vmatpush1.msra.mxu0 0.0
  %845 = vmatprep.subr.mxu0 0.0
  %846 = vmatpush1.msra.mxu0 0.0
  %847 = vmatprep.subr.mxu0 0.0
  %848 = vmatpush1.msra.mxu0 0.0
  %849 = vmatprep.subr.mxu0 0.0
  %850 = vmatpush1.msra.mxu0 0.0
  %851 = vmatprep.subr.mxu0 0.0
  %852 = vmatpush1.msra.mxu0 0.0
  %853 = vmatprep.subr.mxu0 0.0
  %854 = vmatpush1.msra.mxu0 0.0
  %855 = vmatprep.subr.mxu0 0.0
  %856 = vmatpush1.msra.mxu0 0.0
  %857 = vmatprep.subr.mxu0 0.0
  %858 = vmatpush1.msra.mxu0 0.0
  %859 = vmatprep.subr.mxu0 0.0
  %860 = vmatpush1.msra.mxu0 0.0
  %861 = vmatprep.subr.mxu0 0.0
  %862 = vmatpush1.msra.mxu0 0.0
  %863 = vmatprep.subr.mxu0 0.0
  %864 = vmatpush1.msra.mxu0 0.0
  %865 = vmatprep.subr.mxu0 0.0
  %866 = vmatpush1.msra.mxu0 0.0
  %867 = vmatprep.subr.mxu0 0.0
  %868 = vmatpush1.msra.mxu0 0.0
  %869 = vmatprep.subr.mxu0 0.0
  %870 = vmatpush1.msra.mxu0 0.0
  %871 = vmatprep.subr.mxu0 0.0
  %872 = vmatpush1.msra.mxu0 0.0
  %873 = vmatprep.mubr.f32.mxu0 0.0
  %874 = vmatmul.mubr.f32.gmra.mrb[0].mxu0 %v807
  %v875 = vpop.f32.mrb[0].mxu0
  %v876 = vadd.f32 0.0, %v875
  %v877 = vpop.f32.mrb[0].mxu0
  %878 = vdwg.mxu0
  %v879 = vadd.f32 %v180, %v876
  %v880 = vxor.u32 %v879, 2147483648
  %v881 = vmul.f32 %v880, 1.442695
  %v882 = vpow.pop %v881
  %v883 = vadd.f32 %v882, 1.0
  %v884 = vrcp.pop %v883
  %v885 = vmul.f32 1.0, %v884
  %v886 = vtanh.pop %v879
  %v887 = vmul.f32 %v885, %v794
  %889 = vrot.lane.b32.xlu0 %v886, 32
  %v890 = vpop.permute.xlu0 %889
  %v892 = vmul.f32 %v885, %v890
  %894 = vrot.lane.b32.xlu0 %v892, 32
  %v895 = vpop.permute.xlu0 %894
  %v897 = vadd.f32 %v887, %v895
  %v898 = vtanh.pop %v897
  %900 = vrot.lane.b32.xlu0 %v898, 32
  %v901 = vpop.permute.xlu0 %900
  %v903 = vmul.f32 %v885, %v901
  %905 = vrot.lane.b32.xlu0 %v903, 64
  %v906 = vpop.permute.xlu0 %905
  %s908 = scalar_lea.vmem [#allocation2], 48
  %909 = vst.msk [vmem:[%s908] sm:$0xff] %vm188, %v906
  %v910 = vsel %vm188, %v906, 0
  %912 = vmatprep.subr.mxu0 0.0
  %913 = vmatpush1.msra.mxu0 %v35
  %914 = vmatprep.subr.mxu0 0.0
  %915 = vmatpush1.msra.mxu0 %v36
  %916 = vmatprep.subr.mxu0 0.0
  %917 = vmatpush1.msra.mxu0 %v37
  %918 = vmatprep.subr.mxu0 0.0
  %919 = vmatpush1.msra.mxu0 %v38
  %920 = vmatprep.subr.mxu0 0.0
  %921 = vmatpush1.msra.mxu0 0.0
  %922 = vmatprep.subr.mxu0 0.0
  %923 = vmatpush1.msra.mxu0 0.0
  %924 = vmatprep.subr.mxu0 0.0
  %925 = vmatpush1.msra.mxu0 0.0
  %926 = vmatprep.subr.mxu0 0.0
  %927 = vmatpush1.msra.mxu0 0.0
  %928 = vmatprep.subr.mxu0 0.0
  %929 = vmatpush1.msra.mxu0 0.0
  %930 = vmatprep.subr.mxu0 0.0
  %931 = vmatpush1.msra.mxu0 0.0
  %932 = vmatprep.subr.mxu0 0.0
  %933 = vmatpush1.msra.mxu0 0.0
  %934 = vmatprep.subr.mxu0 0.0
  %935 = vmatpush1.msra.mxu0 0.0
  %936 = vmatprep.subr.mxu0 0.0
  %937 = vmatpush1.msra.mxu0 0.0
  %938 = vmatprep.subr.mxu0 0.0
  %939 = vmatpush1.msra.mxu0 0.0
  %940 = vmatprep.subr.mxu0 0.0
  %941 = vmatpush1.msra.mxu0 0.0
  %942 = vmatprep.subr.mxu0 0.0
  %943 = vmatpush1.msra.mxu0 0.0
  %944 = vmatprep.subr.mxu0 0.0
  %945 = vmatpush1.msra.mxu0 0.0
  %946 = vmatprep.subr.mxu0 0.0
  %947 = vmatpush1.msra.mxu0 0.0
  %948 = vmatprep.subr.mxu0 0.0
  %949 = vmatpush1.msra.mxu0 0.0
  %950 = vmatprep.subr.mxu0 0.0
  %951 = vmatpush1.msra.mxu0 0.0
  %952 = vmatprep.subr.mxu0 0.0
  %953 = vmatpush1.msra.mxu0 0.0
  %954 = vmatprep.subr.mxu0 0.0
  %955 = vmatpush1.msra.mxu0 0.0
  %956 = vmatprep.subr.mxu0 0.0
  %957 = vmatpush1.msra.mxu0 0.0
  %958 = vmatprep.subr.mxu0 0.0
  %959 = vmatpush1.msra.mxu0 0.0
  %960 = vmatprep.subr.mxu0 0.0
  %961 = vmatpush1.msra.mxu0 0.0
  %962 = vmatprep.subr.mxu0 0.0
  %963 = vmatpush1.msra.mxu0 0.0
  %964 = vmatprep.subr.mxu0 0.0
  %965 = vmatpush1.msra.mxu0 0.0
  %966 = vmatprep.subr.mxu0 0.0
  %967 = vmatpush1.msra.mxu0 0.0
  %968 = vmatprep.subr.mxu0 0.0
  %969 = vmatpush1.msra.mxu0 0.0
  %970 = vmatprep.subr.mxu0 0.0
  %971 = vmatpush1.msra.mxu0 0.0
  %972 = vmatprep.subr.mxu0 0.0
  %973 = vmatpush1.msra.mxu0 0.0
  %974 = vmatprep.subr.mxu0 0.0
  %975 = vmatpush1.msra.mxu0 0.0
  %976 = vmatprep.mubr.f32.mxu0 0.0
  %977 = vmatmul.mubr.f32.gmra.mrb[0].mxu0 %v910
  %v978 = vpop.f32.mrb[0].mxu0
  %v979 = vadd.f32 0.0, %v978
  %v980 = vpop.f32.mrb[0].mxu0
  %981 = vdwg.mxu0
  %v982 = vadd.f32 %v185, %v979
  %v983 = vxor.u32 %v982, 2147483648
  %v984 = vmul.f32 %v983, 1.442695
  %v985 = vpow.pop %v984
  %v986 = vadd.f32 %v985, 1.0
  %v987 = vrcp.pop %v986
  %v988 = vmul.f32 1.0, %v987
  %v989 = vtanh.pop %v982
  %v990 = vmul.f32 %v988, %v897
  %992 = vrot.lane.b32.xlu0 %v989, 32
  %v993 = vpop.permute.xlu0 %992
  %v995 = vmul.f32 %v988, %v993
  %997 = vrot.lane.b32.xlu0 %v995, 32
  %v998 = vpop.permute.xlu0 %997
  %v1000 = vadd.f32 %v990, %v998
  %v1001 = vtanh.pop %v1000
  %1003 = vrot.lane.b32.xlu0 %v1001, 32
  %v1004 = vpop.permute.xlu0 %1003
  %v1006 = vmul.f32 %v988, %v1004
  %1008 = vrot.lane.b32.xlu0 %v1006, 64
  %v1009 = vpop.permute.xlu0 %1008
  %s1011 = scalar_lea.vmem [#allocation2], 56
  %1012 = vst.msk [vmem:[%s1011] sm:$0xff] %vm188, %v1009
  %v1013 = vld [vmem:[%s4] sm:$0xff]
  %v1014 = vld [vmem:[%s4 + $0x8] sm:$0xff]
  %v1015 = vld [vmem:[%s4 + $0x10] sm:$0xff]
  %v1016 = vld [vmem:[%s4 + $0x18] sm:$0xff]
  %v1017 = vld [vmem:[%s5] sm:$0xff]
  %v1018 = vld [vmem:[%s5 + $0x8] sm:$0xff]
  %v1019 = vld [vmem:[%s5 + $0x10] sm:$0xff]
  %v1020 = vld [vmem:[%s5 + $0x18] sm:$0xff]
  %v1021 = vld [vmem:[%s6] sm:$0x1]
  %v1022 = vld [vmem:[#allocation2] sm:$0xff]
  %v1023 = vld [vmem:[#allocation2 + $0x8] sm:$0xff]
  %v1024 = vld [vmem:[#allocation2 + $0x10] sm:$0xff]
  %v1025 = vld [vmem:[#allocation2 + $0x18] sm:$0xff]
  %v1026 = vld [vmem:[#allocation2 + $0x20] sm:$0xff]
  %v1027 = vld [vmem:[#allocation2 + $0x28] sm:$0xff]
  %v1028 = vld [vmem:[#allocation2 + $0x30] sm:$0xff]
  %v1029 = vld [vmem:[#allocation2 + $0x38] sm:$0xff]
  %v1031 = vlaneseq
  %v1032 = vshrl.u32 %v1031, 7
  %v1033 = vsub.s32 0, %v1032
  %v1034 = vrot.slane %v1021, %v1033
  %v1037 = vsel %vm188, %v1022, 0
  %v1040 = vsel %vm188, %v1023, 0
  %v1043 = vsel %vm188, %v1024, 0
  %v1046 = vsel %vm188, %v1025, 0
  %v1049 = vsel %vm188, %v1026, 0
  %v1052 = vsel %vm188, %v1027, 0
  %v1055 = vsel %vm188, %v1028, 0
  %v1058 = vsel %vm188, %v1029, 0
  %1060 = vmatprep.subr.mxu0 0.0
  %1061 = vmatpush1.msra.mxu0 %v1013
  %1062 = vmatprep.subr.mxu0 0.0
  %1063 = vmatpush1.msra.mxu0 %v1014
  %1064 = vmatprep.subr.mxu0 0.0
  %1065 = vmatpush1.msra.mxu0 %v1015
  %1066 = vmatprep.subr.mxu0 0.0
  %1067 = vmatpush1.msra.mxu0 %v1016
  %1068 = vmatprep.subr.mxu0 0.0
  %1069 = vmatpush1.msra.mxu0 0.0
  %1070 = vmatprep.subr.mxu0 0.0
  %1071 = vmatpush1.msra.mxu0 0.0
  %1072 = vmatprep.subr.mxu0 0.0
  %1073 = vmatpush1.msra.mxu0 0.0
  %1074 = vmatprep.subr.mxu0 0.0
  %1075 = vmatpush1.msra.mxu0 0.0
  %1076 = vmatprep.subr.mxu0 0.0
  %1077 = vmatpush1.msra.mxu0 0.0
  %1078 = vmatprep.subr.mxu0 0.0
  %1079 = vmatpush1.msra.mxu0 0.0
  %1080 = vmatprep.subr.mxu0 0.0
  %1081 = vmatpush1.msra.mxu0 0.0
  %1082 = vmatprep.subr.mxu0 0.0
  %1083 = vmatpush1.msra.mxu0 0.0
  %1084 = vmatprep.subr.mxu0 0.0
  %1085 = vmatpush1.msra.mxu0 0.0
  %1086 = vmatprep.subr.mxu0 0.0
  %1087 = vmatpush1.msra.mxu0 0.0
  %1088 = vmatprep.subr.mxu0 0.0
  %1089 = vmatpush1.msra.mxu0 0.0
  %1090 = vmatprep.subr.mxu0 0.0
  %1091 = vmatpush1.msra.mxu0 0.0
  %1092 = vmatprep.subr.mxu0 0.0
  %1093 = vmatpush1.msra.mxu0 0.0
  %1094 = vmatprep.subr.mxu0 0.0
  %1095 = vmatpush1.msra.mxu0 0.0
  %1096 = vmatprep.subr.mxu0 0.0
  %1097 = vmatpush1.msra.mxu0 0.0
  %1098 = vmatprep.subr.mxu0 0.0
  %1099 = vmatpush1.msra.mxu0 0.0
  %1100 = vmatprep.subr.mxu0 0.0
  %1101 = vmatpush1.msra.mxu0 0.0
  %1102 = vmatprep.subr.mxu0 0.0
  %1103 = vmatpush1.msra.mxu0 0.0
  %1104 = vmatprep.subr.mxu0 0.0
  %1105 = vmatpush1.msra.mxu0 0.0
  %1106 = vmatprep.subr.mxu0 0.0
  %1107 = vmatpush1.msra.mxu0 0.0
  %1108 = vmatprep.subr.mxu0 0.0
  %1109 = vmatpush1.msra.mxu0 0.0
  %1110 = vmatprep.subr.mxu0 0.0
  %1111 = vmatpush1.msra.mxu0 0.0
  %1112 = vmatprep.subr.mxu0 0.0
  %1113 = vmatpush1.msra.mxu0 0.0
  %1114 = vmatprep.subr.mxu0 0.0
  %1115 = vmatpush1.msra.mxu0 0.0
  %1116 = vmatprep.subr.mxu0 0.0
  %1117 = vmatpush1.msra.mxu0 0.0
  %1118 = vmatprep.subr.mxu0 0.0
  %1119 = vmatpush1.msra.mxu0 0.0
  %1120 = vmatprep.subr.mxu0 0.0
  %1121 = vmatpush1.msra.mxu0 0.0
  %1122 = vmatprep.subr.mxu0 0.0
  %1123 = vmatpush1.msra.mxu0 0.0
  %1124 = vmatprep.mubr.f32.mxu0 0.0
  %1125 = vmatmul.mubr.f32.gmra.mrb[0].mxu0 %v1037
  %v1126 = vpop.f32.mrb[0].mxu0
  %v1127 = vadd.f32 %v1034, %v1126
  %v1128 = vpop.f32.mrb[0].mxu0
  %1129 = vmatprep.mubr.f32.mxu0 0.0
  %1130 = vmatmul.mubr.f32.gmra.mrb[0].mxu0 %v1040
  %v1131 = vpop.f32.mrb[0].mxu0
  %v1132 = vadd.f32 %v1034, %v1131
  %v1133 = vpop.f32.mrb[0].mxu0
  %1134 = vmatprep.mubr.f32.mxu0 0.0
  %1135 = vmatmul.mubr.f32.gmra.mrb[0].mxu0 %v1043
  %v1136 = vpop.f32.mrb[0].mxu0
  %v1137 = vadd.f32 %v1034, %v1136
  %v1138 = vpop.f32.mrb[0].mxu0
  %1139 = vmatprep.mubr.f32.mxu0 0.0
  %1140 = vmatmul.mubr.f32.gmra.mrb[0].mxu0 %v1046
  %v1141 = vpop.f32.mrb[0].mxu0
  %v1142 = vadd.f32 %v1034, %v1141
  %v1143 = vpop.f32.mrb[0].mxu0
  %1144 = vmatprep.mubr.f32.mxu0 0.0
  %1145 = vmatmul.mubr.f32.gmra.mrb[0].mxu0 %v1049
  %v1146 = vpop.f32.mrb[0].mxu0
  %v1147 = vadd.f32 %v1034, %v1146
  %v1148 = vpop.f32.mrb[0].mxu0
  %1149 = vmatprep.mubr.f32.mxu0 0.0
  %1150 = vmatmul.mubr.f32.gmra.mrb[0].mxu0 %v1052
  %v1151 = vpop.f32.mrb[0].mxu0
  %v1152 = vadd.f32 %v1034, %v1151
  %v1153 = vpop.f32.mrb[0].mxu0
  %1154 = vmatprep.mubr.f32.mxu0 0.0
  %1155 = vmatmul.mubr.f32.gmra.mrb[0].mxu0 %v1055
  %v1156 = vpop.f32.mrb[0].mxu0
  %v1157 = vadd.f32 %v1034, %v1156
  %v1158 = vpop.f32.mrb[0].mxu0
  %1159 = vmatprep.mubr.f32.mxu0 0.0
  %1160 = vmatmul.mubr.f32.gmra.mrb[0].mxu0 %v1058
  %v1161 = vpop.f32.mrb[0].mxu0
  %v1162 = vadd.f32 %v1034, %v1161
  %v1163 = vpop.f32.mrb[0].mxu0
  %1164 = vdwg.mxu0
  %1165 = vmatprep.subr.mxu0 0.0
  %1166 = vmatpush1.msra.mxu0 %v1017
  %1167 = vmatprep.subr.mxu0 0.0
  %1168 = vmatpush1.msra.mxu0 %v1018
  %1169 = vmatprep.subr.mxu0 0.0
  %1170 = vmatpush1.msra.mxu0 %v1019
  %1171 = vmatprep.subr.mxu0 0.0
  %1172 = vmatpush1.msra.mxu0 %v1020
  %1173 = vmatprep.subr.mxu0 0.0
  %1174 = vmatpush1.msra.mxu0 0.0
  %1175 = vmatprep.subr.mxu0 0.0
  %1176 = vmatpush1.msra.mxu0 0.0
  %1177 = vmatprep.subr.mxu0 0.0
  %1178 = vmatpush1.msra.mxu0 0.0
  %1179 = vmatprep.subr.mxu0 0.0
  %1180 = vmatpush1.msra.mxu0 0.0
  %1181 = vmatprep.subr.mxu0 0.0
  %1182 = vmatpush1.msra.mxu0 0.0
  %1183 = vmatprep.subr.mxu0 0.0
  %1184 = vmatpush1.msra.mxu0 0.0
  %1185 = vmatprep.subr.mxu0 0.0
  %1186 = vmatpush1.msra.mxu0 0.0
  %1187 = vmatprep.subr.mxu0 0.0
  %1188 = vmatpush1.msra.mxu0 0.0
  %1189 = vmatprep.subr.mxu0 0.0
  %1190 = vmatpush1.msra.mxu0 0.0
  %1191 = vmatprep.subr.mxu0 0.0
  %1192 = vmatpush1.msra.mxu0 0.0
  %1193 = vmatprep.subr.mxu0 0.0
  %1194 = vmatpush1.msra.mxu0 0.0
  %1195 = vmatprep.subr.mxu0 0.0
  %1196 = vmatpush1.msra.mxu0 0.0
  %1197 = vmatprep.subr.mxu0 0.0
  %1198 = vmatpush1.msra.mxu0 0.0
  %1199 = vmatprep.subr.mxu0 0.0
  %1200 = vmatpush1.msra.mxu0 0.0
  %1201 = vmatprep.subr.mxu0 0.0
  %1202 = vmatpush1.msra.mxu0 0.0
  %1203 = vmatprep.subr.mxu0 0.0
  %1204 = vmatpush1.msra.mxu0 0.0
  %1205 = vmatprep.subr.mxu0 0.0
  %1206 = vmatpush1.msra.mxu0 0.0
  %1207 = vmatprep.subr.mxu0 0.0
  %1208 = vmatpush1.msra.mxu0 0.0
  %1209 = vmatprep.subr.mxu0 0.0
  %1210 = vmatpush1.msra.mxu0 0.0
  %1211 = vmatprep.subr.mxu0 0.0
  %1212 = vmatpush1.msra.mxu0 0.0
  %1213 = vmatprep.subr.mxu0 0.0
  %1214 = vmatpush1.msra.mxu0 0.0
  %1215 = vmatprep.subr.mxu0 0.0
  %1216 = vmatpush1.msra.mxu0 0.0
  %1217 = vmatprep.subr.mxu0 0.0
  %1218 = vmatpush1.msra.mxu0 0.0
  %1219 = vmatprep.subr.mxu0 0.0
  %1220 = vmatpush1.msra.mxu0 0.0
  %1221 = vmatprep.subr.mxu0 0.0
  %1222 = vmatpush1.msra.mxu0 0.0
  %1223 = vmatprep.subr.mxu0 0.0
  %1224 = vmatpush1.msra.mxu0 0.0
  %1225 = vmatprep.subr.mxu0 0.0
  %1226 = vmatpush1.msra.mxu0 0.0
  %1227 = vmatprep.subr.mxu0 0.0
  %1228 = vmatpush1.msra.mxu0 0.0
  %1229 = vmatprep.mubr.f32.mxu0 0.0
  %1230 = vmatmul.mubr.f32.gmra.mrb[0].mxu0 %v190
  %v1231 = vpop.f32.mrb[0].mxu0
  %v1232 = vadd.f32 0.0, %v1231
  %v1233 = vpop.f32.mrb[0].mxu0
  %1234 = vdwg.mxu0
  %v1235 = vadd.f32 %v1127, %v1232
  %v1236 = vxor.u32 %v1235, 2147483648
  %v1237 = vmul.f32 %v1236, 1.442695
  %v1238 = vpow.pop %v1237
  %v1239 = vadd.f32 %v1238, 1.0
  %v1240 = vrcp.pop %v1239
  %v1241 = vmul.f32 1.0, %v1240
  %v1242 = vtanh.pop %v1235
  %v1243 = vmul.f32 %v1241, 0.0
  %1245 = vrot.lane.b32.xlu0 %v1242, 32
  %v1246 = vpop.permute.xlu0 %1245
  %v1248 = vmul.f32 %v1241, %v1246
  %1250 = vrot.lane.b32.xlu0 %v1248, 32
  %v1251 = vpop.permute.xlu0 %1250
  %v1253 = vadd.f32 %v1243, %v1251
  %v1254 = vtanh.pop %v1253
  %1256 = vrot.lane.b32.xlu0 %v1254, 32
  %v1257 = vpop.permute.xlu0 %1256
  %v1259 = vmul.f32 %v1241, %v1257
  %1261 = vrot.lane.b32.xlu0 %v1259, 64
  %v1262 = vpop.permute.xlu0 %1261
  %v1263 = vsel %vm188, %v1262, 0
  %1265 = vmatprep.subr.mxu0 0.0
  %1266 = vmatpush1.msra.mxu0 %v1017
  %1267 = vmatprep.subr.mxu0 0.0
  %1268 = vmatpush1.msra.mxu0 %v1018
  %1269 = vmatprep.subr.mxu0 0.0
  %1270 = vmatpush1.msra.mxu0 %v1019
  %1271 = vmatprep.subr.mxu0 0.0
  %1272 = vmatpush1.msra.mxu0 %v1020
  %1273 = vmatprep.subr.mxu0 0.0
  %1274 = vmatpush1.msra.mxu0 0.0
  %1275 = vmatprep.subr.mxu0 0.0
  %1276 = vmatpush1.msra.mxu0 0.0
  %1277 = vmatprep.subr.mxu0 0.0
  %1278 = vmatpush1.msra.mxu0 0.0
  %1279 = vmatprep.subr.mxu0 0.0
  %1280 = vmatpush1.msra.mxu0 0.0
  %1281 = vmatprep.subr.mxu0 0.0
  %1282 = vmatpush1.msra.mxu0 0.0
  %1283 = vmatprep.subr.mxu0 0.0
  %1284 = vmatpush1.msra.mxu0 0.0
  %1285 = vmatprep.subr.mxu0 0.0
  %1286 = vmatpush1.msra.mxu0 0.0
  %1287 = vmatprep.subr.mxu0 0.0
  %1288 = vmatpush1.msra.mxu0 0.0
  %1289 = vmatprep.subr.mxu0 0.0
  %1290 = vmatpush1.msra.mxu0 0.0
  %1291 = vmatprep.subr.mxu0 0.0
  %1292 = vmatpush1.msra.mxu0 0.0
  %1293 = vmatprep.subr.mxu0 0.0
  %1294 = vmatpush1.msra.mxu0 0.0
  %1295 = vmatprep.subr.mxu0 0.0
  %1296 = vmatpush1.msra.mxu0 0.0
  %1297 = vmatprep.subr.mxu0 0.0
  %1298 = vmatpush1.msra.mxu0 0.0
  %1299 = vmatprep.subr.mxu0 0.0
  %1300 = vmatpush1.msra.mxu0 0.0
  %1301 = vmatprep.subr.mxu0 0.0
  %1302 = vmatpush1.msra.mxu0 0.0
  %1303 = vmatprep.subr.mxu0 0.0
  %1304 = vmatpush1.msra.mxu0 0.0
  %1305 = vmatprep.subr.mxu0 0.0
  %1306 = vmatpush1.msra.mxu0 0.0
  %1307 = vmatprep.subr.mxu0 0.0
  %1308 = vmatpush1.msra.mxu0 0.0
  %1309 = vmatprep.subr.mxu0 0.0
  %1310 = vmatpush1.msra.mxu0 0.0
  %1311 = vmatprep.subr.mxu0 0.0
  %1312 = vmatpush1.msra.mxu0 0.0
  %1313 = vmatprep.subr.mxu0 0.0
  %1314 = vmatpush1.msra.mxu0 0.0
  %1315 = vmatprep.subr.mxu0 0.0
  %1316 = vmatpush1.msra.mxu0 0.0
  %1317 = vmatprep.subr.mxu0 0.0
  %1318 = vmatpush1.msra.mxu0 0.0
  %1319 = vmatprep.subr.mxu0 0.0
  %1320 = vmatpush1.msra.mxu0 0.0
  %1321 = vmatprep.subr.mxu0 0.0
  %1322 = vmatpush1.msra.mxu0 0.0
  %1323 = vmatprep.subr.mxu0 0.0
  %1324 = vmatpush1.msra.mxu0 0.0
  %1325 = vmatprep.subr.mxu0 0.0
  %1326 = vmatpush1.msra.mxu0 0.0
  %1327 = vmatprep.subr.mxu0 0.0
  %1328 = vmatpush1.msra.mxu0 0.0
  %1329 = vmatprep.mubr.f32.mxu0 0.0
  %1330 = vmatmul.mubr.f32.gmra.mrb[0].mxu0 %v1263
  %v1331 = vpop.f32.mrb[0].mxu0
  %v1332 = vadd.f32 0.0, %v1331
  %v1333 = vpop.f32.mrb[0].mxu0
  %1334 = vdwg.mxu0
  %v1335 = vadd.f32 %v1132, %v1332
  %v1336 = vxor.u32 %v1335, 2147483648
  %v1337 = vmul.f32 %v1336, 1.442695
  %v1338 = vpow.pop %v1337
  %v1339 = vadd.f32 %v1338, 1.0
  %v1340 = vrcp.pop %v1339
  %v1341 = vmul.f32 1.0, %v1340
  %v1342 = vtanh.pop %v1335
  %v1343 = vmul.f32 %v1341, %v1253
  %1345 = vrot.lane.b32.xlu0 %v1342, 32
  %v1346 = vpop.permute.xlu0 %1345
  %v1348 = vmul.f32 %v1341, %v1346
  %1350 = vrot.lane.b32.xlu0 %v1348, 32
  %v1351 = vpop.permute.xlu0 %1350
  %v1353 = vadd.f32 %v1343, %v1351
  %v1354 = vtanh.pop %v1353
  %1356 = vrot.lane.b32.xlu0 %v1354, 32
  %v1357 = vpop.permute.xlu0 %1356
  %v1359 = vmul.f32 %v1341, %v1357
  %1361 = vrot.lane.b32.xlu0 %v1359, 64
  %v1362 = vpop.permute.xlu0 %1361
  %v1363 = vsel %vm188, %v1362, 0
  %1365 = vmatprep.subr.mxu0 0.0
  %1366 = vmatpush1.msra.mxu0 %v1017
  %1367 = vmatprep.subr.mxu0 0.0
  %1368 = vmatpush1.msra.mxu0 %v1018
  %1369 = vmatprep.subr.mxu0 0.0
  %1370 = vmatpush1.msra.mxu0 %v1019
  %1371 = vmatprep.subr.mxu0 0.0
  %1372 = vmatpush1.msra.mxu0 %v1020
  %1373 = vmatprep.subr.mxu0 0.0
  %1374 = vmatpush1.msra.mxu0 0.0
  %1375 = vmatprep.subr.mxu0 0.0
  %1376 = vmatpush1.msra.mxu0 0.0
  %1377 = vmatprep.subr.mxu0 0.0
  %1378 = vmatpush1.msra.mxu0 0.0
  %1379 = vmatprep.subr.mxu0 0.0
  %1380 = vmatpush1.msra.mxu0 0.0
  %1381 = vmatprep.subr.mxu0 0.0
  %1382 = vmatpush1.msra.mxu0 0.0
  %1383 = vmatprep.subr.mxu0 0.0
  %1384 = vmatpush1.msra.mxu0 0.0
  %1385 = vmatprep.subr.mxu0 0.0
  %1386 = vmatpush1.msra.mxu0 0.0
  %1387 = vmatprep.subr.mxu0 0.0
  %1388 = vmatpush1.msra.mxu0 0.0
  %1389 = vmatprep.subr.mxu0 0.0
  %1390 = vmatpush1.msra.mxu0 0.0
  %1391 = vmatprep.subr.mxu0 0.0
  %1392 = vmatpush1.msra.mxu0 0.0
  %1393 = vmatprep.subr.mxu0 0.0
  %1394 = vmatpush1.msra.mxu0 0.0
  %1395 = vmatprep.subr.mxu0 0.0
  %1396 = vmatpush1.msra.mxu0 0.0
  %1397 = vmatprep.subr.mxu0 0.0
  %1398 = vmatpush1.msra.mxu0 0.0
  %1399 = vmatprep.subr.mxu0 0.0
  %1400 = vmatpush1.msra.mxu0 0.0
  %1401 = vmatprep.subr.mxu0 0.0
  %1402 = vmatpush1.msra.mxu0 0.0
  %1403 = vmatprep.subr.mxu0 0.0
  %1404 = vmatpush1.msra.mxu0 0.0
  %1405 = vmatprep.subr.mxu0 0.0
  %1406 = vmatpush1.msra.mxu0 0.0
  %1407 = vmatprep.subr.mxu0 0.0
  %1408 = vmatpush1.msra.mxu0 0.0
  %1409 = vmatprep.subr.mxu0 0.0
  %1410 = vmatpush1.msra.mxu0 0.0
  %1411 = vmatprep.subr.mxu0 0.0
  %1412 = vmatpush1.msra.mxu0 0.0
  %1413 = vmatprep.subr.mxu0 0.0
  %1414 = vmatpush1.msra.mxu0 0.0
  %1415 = vmatprep.subr.mxu0 0.0
  %1416 = vmatpush1.msra.mxu0 0.0
  %1417 = vmatprep.subr.mxu0 0.0
  %1418 = vmatpush1.msra.mxu0 0.0
  %1419 = vmatprep.subr.mxu0 0.0
  %1420 = vmatpush1.msra.mxu0 0.0
  %1421 = vmatprep.subr.mxu0 0.0
  %1422 = vmatpush1.msra.mxu0 0.0
  %1423 = vmatprep.subr.mxu0 0.0
  %1424 = vmatpush1.msra.mxu0 0.0
  %1425 = vmatprep.subr.mxu0 0.0
  %1426 = vmatpush1.msra.mxu0 0.0
  %1427 = vmatprep.subr.mxu0 0.0
  %1428 = vmatpush1.msra.mxu0 0.0
  %1429 = vmatprep.mubr.f32.mxu0 0.0
  %1430 = vmatmul.mubr.f32.gmra.mrb[0].mxu0 %v1363
  %v1431 = vpop.f32.mrb[0].mxu0
  %v1432 = vadd.f32 0.0, %v1431
  %v1433 = vpop.f32.mrb[0].mxu0
  %1434 = vdwg.mxu0
  %v1435 = vadd.f32 %v1137, %v1432
  %v1436 = vxor.u32 %v1435, 2147483648
  %v1437 = vmul.f32 %v1436, 1.442695
  %v1438 = vpow.pop %v1437
  %v1439 = vadd.f32 %v1438, 1.0
  %v1440 = vrcp.pop %v1439
  %v1441 = vmul.f32 1.0, %v1440
  %v1442 = vtanh.pop %v1435
  %v1443 = vmul.f32 %v1441, %v1353
  %1445 = vrot.lane.b32.xlu0 %v1442, 32
  %v1446 = vpop.permute.xlu0 %1445
  %v1448 = vmul.f32 %v1441, %v1446
  %1450 = vrot.lane.b32.xlu0 %v1448, 32
  %v1451 = vpop.permute.xlu0 %1450
  %v1453 = vadd.f32 %v1443, %v1451
  %v1454 = vtanh.pop %v1453
  %1456 = vrot.lane.b32.xlu0 %v1454, 32
  %v1457 = vpop.permute.xlu0 %1456
  %v1459 = vmul.f32 %v1441, %v1457
  %1461 = vrot.lane.b32.xlu0 %v1459, 64
  %v1462 = vpop.permute.xlu0 %1461
  %v1463 = vsel %vm188, %v1462, 0
  %1465 = vmatprep.subr.mxu0 0.0
  %1466 = vmatpush1.msra.mxu0 %v1017
  %1467 = vmatprep.subr.mxu0 0.0
  %1468 = vmatpush1.msra.mxu0 %v1018
  %1469 = vmatprep.subr.mxu0 0.0
  %1470 = vmatpush1.msra.mxu0 %v1019
  %1471 = vmatprep.subr.mxu0 0.0
  %1472 = vmatpush1.msra.mxu0 %v1020
  %1473 = vmatprep.subr.mxu0 0.0
  %1474 = vmatpush1.msra.mxu0 0.0
  %1475 = vmatprep.subr.mxu0 0.0
  %1476 = vmatpush1.msra.mxu0 0.0
  %1477 = vmatprep.subr.mxu0 0.0
  %1478 = vmatpush1.msra.mxu0 0.0
  %1479 = vmatprep.subr.mxu0 0.0
  %1480 = vmatpush1.msra.mxu0 0.0
  %1481 = vmatprep.subr.mxu0 0.0
  %1482 = vmatpush1.msra.mxu0 0.0
  %1483 = vmatprep.subr.mxu0 0.0
  %1484 = vmatpush1.msra.mxu0 0.0
  %1485 = vmatprep.subr.mxu0 0.0
  %1486 = vmatpush1.msra.mxu0 0.0
  %1487 = vmatprep.subr.mxu0 0.0
  %1488 = vmatpush1.msra.mxu0 0.0
  %1489 = vmatprep.subr.mxu0 0.0
  %1490 = vmatpush1.msra.mxu0 0.0
  %1491 = vmatprep.subr.mxu0 0.0
  %1492 = vmatpush1.msra.mxu0 0.0
  %1493 = vmatprep.subr.mxu0 0.0
  %1494 = vmatpush1.msra.mxu0 0.0
  %1495 = vmatprep.subr.mxu0 0.0
  %1496 = vmatpush1.msra.mxu0 0.0
  %1497 = vmatprep.subr.mxu0 0.0
  %1498 = vmatpush1.msra.mxu0 0.0
  %1499 = vmatprep.subr.mxu0 0.0
  %1500 = vmatpush1.msra.mxu0 0.0
  %1501 = vmatprep.subr.mxu0 0.0
  %1502 = vmatpush1.msra.mxu0 0.0
  %1503 = vmatprep.subr.mxu0 0.0
  %1504 = vmatpush1.msra.mxu0 0.0
  %1505 = vmatprep.subr.mxu0 0.0
  %1506 = vmatpush1.msra.mxu0 0.0
  %1507 = vmatprep.subr.mxu0 0.0
  %1508 = vmatpush1.msra.mxu0 0.0
  %1509 = vmatprep.subr.mxu0 0.0
  %1510 = vmatpush1.msra.mxu0 0.0
  %1511 = vmatprep.subr.mxu0 0.0
  %1512 = vmatpush1.msra.mxu0 0.0
  %1513 = vmatprep.subr.mxu0 0.0
  %1514 = vmatpush1.msra.mxu0 0.0
  %1515 = vmatprep.subr.mxu0 0.0
  %1516 = vmatpush1.msra.mxu0 0.0
  %1517 = vmatprep.subr.mxu0 0.0
  %1518 = vmatpush1.msra.mxu0 0.0
  %1519 = vmatprep.subr.mxu0 0.0
  %1520 = vmatpush1.msra.mxu0 0.0
  %1521 = vmatprep.subr.mxu0 0.0
  %1522 = vmatpush1.msra.mxu0 0.0
  %1523 = vmatprep.subr.mxu0 0.0
  %1524 = vmatpush1.msra.mxu0 0.0
  %1525 = vmatprep.subr.mxu0 0.0
  %1526 = vmatpush1.msra.mxu0 0.0
  %1527 = vmatprep.subr.mxu0 0.0
  %1528 = vmatpush1.msra.mxu0 0.0
  %1529 = vmatprep.mubr.f32.mxu0 0.0
  %1530 = vmatmul.mubr.f32.gmra.mrb[0].mxu0 %v1463
  %v1531 = vpop.f32.mrb[0].mxu0
  %v1532 = vadd.f32 0.0, %v1531
  %v1533 = vpop.f32.mrb[0].mxu0
  %1534 = vdwg.mxu0
  %v1535 = vadd.f32 %v1142, %v1532
  %v1536 = vxor.u32 %v1535, 2147483648
  %v1537 = vmul.f32 %v1536, 1.442695
  %v1538 = vpow.pop %v1537
  %v1539 = vadd.f32 %v1538, 1.0
  %v1540 = vrcp.pop %v1539
  %v1541 = vmul.f32 1.0, %v1540
  %v1542 = vtanh.pop %v1535
  %v1543 = vmul.f32 %v1541, %v1453
  %1545 = vrot.lane.b32.xlu0 %v1542, 32
  %v1546 = vpop.permute.xlu0 %1545
  %v1548 = vmul.f32 %v1541, %v1546
  %1550 = vrot.lane.b32.xlu0 %v1548, 32
  %v1551 = vpop.permute.xlu0 %1550
  %v1553 = vadd.f32 %v1543, %v1551
  %v1554 = vtanh.pop %v1553
  %1556 = vrot.lane.b32.xlu0 %v1554, 32
  %v1557 = vpop.permute.xlu0 %1556
  %v1559 = vmul.f32 %v1541, %v1557
  %1561 = vrot.lane.b32.xlu0 %v1559, 64
  %v1562 = vpop.permute.xlu0 %1561
  %v1563 = vsel %vm188, %v1562, 0
  %1565 = vmatprep.subr.mxu0 0.0
  %1566 = vmatpush1.msra.mxu0 %v1017
  %1567 = vmatprep.subr.mxu0 0.0
  %1568 = vmatpush1.msra.mxu0 %v1018
  %1569 = vmatprep.subr.mxu0 0.0
  %1570 = vmatpush1.msra.mxu0 %v1019
  %1571 = vmatprep.subr.mxu0 0.0
  %1572 = vmatpush1.msra.mxu0 %v1020
  %1573 = vmatprep.subr.mxu0 0.0
  %1574 = vmatpush1.msra.mxu0 0.0
  %1575 = vmatprep.subr.mxu0 0.0
  %1576 = vmatpush1.msra.mxu0 0.0
  %1577 = vmatprep.subr.mxu0 0.0
  %1578 = vmatpush1.msra.mxu0 0.0
  %1579 = vmatprep.subr.mxu0 0.0
  %1580 = vmatpush1.msra.mxu0 0.0
  %1581 = vmatprep.subr.mxu0 0.0
  %1582 = vmatpush1.msra.mxu0 0.0
  %1583 = vmatprep.subr.mxu0 0.0
  %1584 = vmatpush1.msra.mxu0 0.0
  %1585 = vmatprep.subr.mxu0 0.0
  %1586 = vmatpush1.msra.mxu0 0.0
  %1587 = vmatprep.subr.mxu0 0.0
  %1588 = vmatpush1.msra.mxu0 0.0
  %1589 = vmatprep.subr.mxu0 0.0
  %1590 = vmatpush1.msra.mxu0 0.0
  %1591 = vmatprep.subr.mxu0 0.0
  %1592 = vmatpush1.msra.mxu0 0.0
  %1593 = vmatprep.subr.mxu0 0.0
  %1594 = vmatpush1.msra.mxu0 0.0
  %1595 = vmatprep.subr.mxu0 0.0
  %1596 = vmatpush1.msra.mxu0 0.0
  %1597 = vmatprep.subr.mxu0 0.0
  %1598 = vmatpush1.msra.mxu0 0.0
  %1599 = vmatprep.subr.mxu0 0.0
  %1600 = vmatpush1.msra.mxu0 0.0
  %1601 = vmatprep.subr.mxu0 0.0
  %1602 = vmatpush1.msra.mxu0 0.0
  %1603 = vmatprep.subr.mxu0 0.0
  %1604 = vmatpush1.msra.mxu0 0.0
  %1605 = vmatprep.subr.mxu0 0.0
  %1606 = vmatpush1.msra.mxu0 0.0
  %1607 = vmatprep.subr.mxu0 0.0
  %1608 = vmatpush1.msra.mxu0 0.0
  %1609 = vmatprep.subr.mxu0 0.0
  %1610 = vmatpush1.msra.mxu0 0.0
  %1611 = vmatprep.subr.mxu0 0.0
  %1612 = vmatpush1.msra.mxu0 0.0
  %1613 = vmatprep.subr.mxu0 0.0
  %1614 = vmatpush1.msra.mxu0 0.0
  %1615 = vmatprep.subr.mxu0 0.0
  %1616 = vmatpush1.msra.mxu0 0.0
  %1617 = vmatprep.subr.mxu0 0.0
  %1618 = vmatpush1.msra.mxu0 0.0
  %1619 = vmatprep.subr.mxu0 0.0
  %1620 = vmatpush1.msra.mxu0 0.0
  %1621 = vmatprep.subr.mxu0 0.0
  %1622 = vmatpush1.msra.mxu0 0.0
  %1623 = vmatprep.subr.mxu0 0.0
  %1624 = vmatpush1.msra.mxu0 0.0
  %1625 = vmatprep.subr.mxu0 0.0
  %1626 = vmatpush1.msra.mxu0 0.0
  %1627 = vmatprep.subr.mxu0 0.0
  %1628 = vmatpush1.msra.mxu0 0.0
  %1629 = vmatprep.mubr.f32.mxu0 0.0
  %1630 = vmatmul.mubr.f32.gmra.mrb[0].mxu0 %v1563
  %v1631 = vpop.f32.mrb[0].mxu0
  %v1632 = vadd.f32 0.0, %v1631
  %v1633 = vpop.f32.mrb[0].mxu0
  %1634 = vdwg.mxu0
  %v1635 = vadd.f32 %v1147, %v1632
  %v1636 = vxor.u32 %v1635, 2147483648
  %v1637 = vmul.f32 %v1636, 1.442695
  %v1638 = vpow.pop %v1637
  %v1639 = vadd.f32 %v1638, 1.0
  %v1640 = vrcp.pop %v1639
  %v1641 = vmul.f32 1.0, %v1640
  %v1642 = vtanh.pop %v1635
  %v1643 = vmul.f32 %v1641, %v1553
  %1645 = vrot.lane.b32.xlu0 %v1642, 32
  %v1646 = vpop.permute.xlu0 %1645
  %v1648 = vmul.f32 %v1641, %v1646
  %1650 = vrot.lane.b32.xlu0 %v1648, 32
  %v1651 = vpop.permute.xlu0 %1650
  %v1653 = vadd.f32 %v1643, %v1651
  %v1654 = vtanh.pop %v1653
  %1656 = vrot.lane.b32.xlu0 %v1654, 32
  %v1657 = vpop.permute.xlu0 %1656
  %v1659 = vmul.f32 %v1641, %v1657
  %1661 = vrot.lane.b32.xlu0 %v1659, 64
  %v1662 = vpop.permute.xlu0 %1661
  %v1663 = vsel %vm188, %v1662, 0
  %1665 = vmatprep.subr.mxu0 0.0
  %1666 = vmatpush1.msra.mxu0 %v1017
  %1667 = vmatprep.subr.mxu0 0.0
  %1668 = vmatpush1.msra.mxu0 %v1018
  %1669 = vmatprep.subr.mxu0 0.0
  %1670 = vmatpush1.msra.mxu0 %v1019
  %1671 = vmatprep.subr.mxu0 0.0
  %1672 = vmatpush1.msra.mxu0 %v1020
  %1673 = vmatprep.subr.mxu0 0.0
  %1674 = vmatpush1.msra.mxu0 0.0
  %1675 = vmatprep.subr.mxu0 0.0
  %1676 = vmatpush1.msra.mxu0 0.0
  %1677 = vmatprep.subr.mxu0 0.0
  %1678 = vmatpush1.msra.mxu0 0.0
  %1679 = vmatprep.subr.mxu0 0.0
  %1680 = vmatpush1.msra.mxu0 0.0
  %1681 = vmatprep.subr.mxu0 0.0
  %1682 = vmatpush1.msra.mxu0 0.0
  %1683 = vmatprep.subr.mxu0 0.0
  %1684 = vmatpush1.msra.mxu0 0.0
  %1685 = vmatprep.subr.mxu0 0.0
  %1686 = vmatpush1.msra.mxu0 0.0
  %1687 = vmatprep.subr.mxu0 0.0
  %1688 = vmatpush1.msra.mxu0 0.0
  %1689 = vmatprep.subr.mxu0 0.0
  %1690 = vmatpush1.msra.mxu0 0.0
  %1691 = vmatprep.subr.mxu0 0.0
  %1692 = vmatpush1.msra.mxu0 0.0
  %1693 = vmatprep.subr.mxu0 0.0
  %1694 = vmatpush1.msra.mxu0 0.0
  %1695 = vmatprep.subr.mxu0 0.0
  %1696 = vmatpush1.msra.mxu0 0.0
  %1697 = vmatprep.subr.mxu0 0.0
  %1698 = vmatpush1.msra.mxu0 0.0
  %1699 = vmatprep.subr.mxu0 0.0
  %1700 = vmatpush1.msra.mxu0 0.0
  %1701 = vmatprep.subr.mxu0 0.0
  %1702 = vmatpush1.msra.mxu0 0.0
  %1703 = vmatprep.subr.mxu0 0.0
  %1704 = vmatpush1.msra.mxu0 0.0
  %1705 = vmatprep.subr.mxu0 0.0
  %1706 = vmatpush1.msra.mxu0 0.0
  %1707 = vmatprep.subr.mxu0 0.0
  %1708 = vmatpush1.msra.mxu0 0.0
  %1709 = vmatprep.subr.mxu0 0.0
  %1710 = vmatpush1.msra.mxu0 0.0
  %1711 = vmatprep.subr.mxu0 0.0
  %1712 = vmatpush1.msra.mxu0 0.0
  %1713 = vmatprep.subr.mxu0 0.0
  %1714 = vmatpush1.msra.mxu0 0.0
  %1715 = vmatprep.subr.mxu0 0.0
  %1716 = vmatpush1.msra.mxu0 0.0
  %1717 = vmatprep.subr.mxu0 0.0
  %1718 = vmatpush1.msra.mxu0 0.0
  %1719 = vmatprep.subr.mxu0 0.0
  %1720 = vmatpush1.msra.mxu0 0.0
  %1721 = vmatprep.subr.mxu0 0.0
  %1722 = vmatpush1.msra.mxu0 0.0
  %1723 = vmatprep.subr.mxu0 0.0
  %1724 = vmatpush1.msra.mxu0 0.0
  %1725 = vmatprep.subr.mxu0 0.0
  %1726 = vmatpush1.msra.mxu0 0.0
  %1727 = vmatprep.subr.mxu0 0.0
  %1728 = vmatpush1.msra.mxu0 0.0
  %1729 = vmatprep.mubr.f32.mxu0 0.0
  %1730 = vmatmul.mubr.f32.gmra.mrb[0].mxu0 %v1663
  %v1731 = vpop.f32.mrb[0].mxu0
  %v1732 = vadd.f32 0.0, %v1731
  %v1733 = vpop.f32.mrb[0].mxu0
  %1734 = vdwg.mxu0
  %v1735 = vadd.f32 %v1152, %v1732
  %v1736 = vxor.u32 %v1735, 2147483648
  %v1737 = vmul.f32 %v1736, 1.442695
  %v1738 = vpow.pop %v1737
  %v1739 = vadd.f32 %v1738, 1.0
  %v1740 = vrcp.pop %v1739
  %v1741 = vmul.f32 1.0, %v1740
  %v1742 = vtanh.pop %v1735
  %v1743 = vmul.f32 %v1741, %v1653
  %1745 = vrot.lane.b32.xlu0 %v1742, 32
  %v1746 = vpop.permute.xlu0 %1745
  %v1748 = vmul.f32 %v1741, %v1746
  %1750 = vrot.lane.b32.xlu0 %v1748, 32
  %v1751 = vpop.permute.xlu0 %1750
  %v1753 = vadd.f32 %v1743, %v1751
  %v1754 = vtanh.pop %v1753
  %1756 = vrot.lane.b32.xlu0 %v1754, 32
  %v1757 = vpop.permute.xlu0 %1756
  %v1759 = vmul.f32 %v1741, %v1757
  %1761 = vrot.lane.b32.xlu0 %v1759, 64
  %v1762 = vpop.permute.xlu0 %1761
  %v1763 = vsel %vm188, %v1762, 0
  %1765 = vmatprep.subr.mxu0 0.0
  %1766 = vmatpush1.msra.mxu0 %v1017
  %1767 = vmatprep.subr.mxu0 0.0
  %1768 = vmatpush1.msra.mxu0 %v1018
  %1769 = vmatprep.subr.mxu0 0.0
  %1770 = vmatpush1.msra.mxu0 %v1019
  %1771 = vmatprep.subr.mxu0 0.0
  %1772 = vmatpush1.msra.mxu0 %v1020
  %1773 = vmatprep.subr.mxu0 0.0
  %1774 = vmatpush1.msra.mxu0 0.0
  %1775 = vmatprep.subr.mxu0 0.0
  %1776 = vmatpush1.msra.mxu0 0.0
  %1777 = vmatprep.subr.mxu0 0.0
  %1778 = vmatpush1.msra.mxu0 0.0
  %1779 = vmatprep.subr.mxu0 0.0
  %1780 = vmatpush1.msra.mxu0 0.0
  %1781 = vmatprep.subr.mxu0 0.0
  %1782 = vmatpush1.msra.mxu0 0.0
  %1783 = vmatprep.subr.mxu0 0.0
  %1784 = vmatpush1.msra.mxu0 0.0
  %1785 = vmatprep.subr.mxu0 0.0
  %1786 = vmatpush1.msra.mxu0 0.0
  %1787 = vmatprep.subr.mxu0 0.0
  %1788 = vmatpush1.msra.mxu0 0.0
  %1789 = vmatprep.subr.mxu0 0.0
  %1790 = vmatpush1.msra.mxu0 0.0
  %1791 = vmatprep.subr.mxu0 0.0
  %1792 = vmatpush1.msra.mxu0 0.0
  %1793 = vmatprep.subr.mxu0 0.0
  %1794 = vmatpush1.msra.mxu0 0.0
  %1795 = vmatprep.subr.mxu0 0.0
  %1796 = vmatpush1.msra.mxu0 0.0
  %1797 = vmatprep.subr.mxu0 0.0
  %1798 = vmatpush1.msra.mxu0 0.0
  %1799 = vmatprep.subr.mxu0 0.0
  %1800 = vmatpush1.msra.mxu0 0.0
  %1801 = vmatprep.subr.mxu0 0.0
  %1802 = vmatpush1.msra.mxu0 0.0
  %1803 = vmatprep.subr.mxu0 0.0
  %1804 = vmatpush1.msra.mxu0 0.0
  %1805 = vmatprep.subr.mxu0 0.0
  %1806 = vmatpush1.msra.mxu0 0.0
  %1807 = vmatprep.subr.mxu0 0.0
  %1808 = vmatpush1.msra.mxu0 0.0
  %1809 = vmatprep.subr.mxu0 0.0
  %1810 = vmatpush1.msra.mxu0 0.0
  %1811 = vmatprep.subr.mxu0 0.0
  %1812 = vmatpush1.msra.mxu0 0.0
  %1813 = vmatprep.subr.mxu0 0.0
  %1814 = vmatpush1.msra.mxu0 0.0
  %1815 = vmatprep.subr.mxu0 0.0
  %1816 = vmatpush1.msra.mxu0 0.0
  %1817 = vmatprep.subr.mxu0 0.0
  %1818 = vmatpush1.msra.mxu0 0.0
  %1819 = vmatprep.subr.mxu0 0.0
  %1820 = vmatpush1.msra.mxu0 0.0
  %1821 = vmatprep.subr.mxu0 0.0
  %1822 = vmatpush1.msra.mxu0 0.0
  %1823 = vmatprep.subr.mxu0 0.0
  %1824 = vmatpush1.msra.mxu0 0.0
  %1825 = vmatprep.subr.mxu0 0.0
  %1826 = vmatpush1.msra.mxu0 0.0
  %1827 = vmatprep.subr.mxu0 0.0
  %1828 = vmatpush1.msra.mxu0 0.0
  %1829 = vmatprep.mubr.f32.mxu0 0.0
  %1830 = vmatmul.mubr.f32.gmra.mrb[0].mxu0 %v1763
  %v1831 = vpop.f32.mrb[0].mxu0
  %v1832 = vadd.f32 0.0, %v1831
  %v1833 = vpop.f32.mrb[0].mxu0
  %1834 = vdwg.mxu0
  %v1835 = vadd.f32 %v1157, %v1832
  %v1836 = vxor.u32 %v1835, 2147483648
  %v1837 = vmul.f32 %v1836, 1.442695
  %v1838 = vpow.pop %v1837
  %v1839 = vadd.f32 %v1838, 1.0
  %v1840 = vrcp.pop %v1839
  %v1841 = vmul.f32 1.0, %v1840
  %v1842 = vtanh.pop %v1835
  %v1843 = vmul.f32 %v1841, %v1753
  %1845 = vrot.lane.b32.xlu0 %v1842, 32
  %v1846 = vpop.permute.xlu0 %1845
  %v1848 = vmul.f32 %v1841, %v1846
  %1850 = vrot.lane.b32.xlu0 %v1848, 32
  %v1851 = vpop.permute.xlu0 %1850
  %v1853 = vadd.f32 %v1843, %v1851
  %v1854 = vtanh.pop %v1853
  %1856 = vrot.lane.b32.xlu0 %v1854, 32
  %v1857 = vpop.permute.xlu0 %1856
  %v1859 = vmul.f32 %v1841, %v1857
  %1861 = vrot.lane.b32.xlu0 %v1859, 64
  %v1862 = vpop.permute.xlu0 %1861
  %v1863 = vsel %vm188, %v1862, 0
  %1865 = vmatprep.subr.mxu0 0.0
  %1866 = vmatpush1.msra.mxu0 %v1017
  %1867 = vmatprep.subr.mxu0 0.0
  %1868 = vmatpush1.msra.mxu0 %v1018
  %1869 = vmatprep.subr.mxu0 0.0
  %1870 = vmatpush1.msra.mxu0 %v1019
  %1871 = vmatprep.subr.mxu0 0.0
  %1872 = vmatpush1.msra.mxu0 %v1020
  %1873 = vmatprep.subr.mxu0 0.0
  %1874 = vmatpush1.msra.mxu0 0.0
  %1875 = vmatprep.subr.mxu0 0.0
  %1876 = vmatpush1.msra.mxu0 0.0
  %1877 = vmatprep.subr.mxu0 0.0
  %1878 = vmatpush1.msra.mxu0 0.0
  %1879 = vmatprep.subr.mxu0 0.0
  %1880 = vmatpush1.msra.mxu0 0.0
  %1881 = vmatprep.subr.mxu0 0.0
  %1882 = vmatpush1.msra.mxu0 0.0
  %1883 = vmatprep.subr.mxu0 0.0
  %1884 = vmatpush1.msra.mxu0 0.0
  %1885 = vmatprep.subr.mxu0 0.0
  %1886 = vmatpush1.msra.mxu0 0.0
  %1887 = vmatprep.subr.mxu0 0.0
  %1888 = vmatpush1.msra.mxu0 0.0
  %1889 = vmatprep.subr.mxu0 0.0
  %1890 = vmatpush1.msra.mxu0 0.0
  %1891 = vmatprep.subr.mxu0 0.0
  %1892 = vmatpush1.msra.mxu0 0.0
  %1893 = vmatprep.subr.mxu0 0.0
  %1894 = vmatpush1.msra.mxu0 0.0
  %1895 = vmatprep.subr.mxu0 0.0
  %1896 = vmatpush1.msra.mxu0 0.0
  %1897 = vmatprep.subr.mxu0 0.0
  %1898 = vmatpush1.msra.mxu0 0.0
  %1899 = vmatprep.subr.mxu0 0.0
  %1900 = vmatpush1.msra.mxu0 0.0
  %1901 = vmatprep.subr.mxu0 0.0
  %1902 = vmatpush1.msra.mxu0 0.0
  %1903 = vmatprep.subr.mxu0 0.0
  %1904 = vmatpush1.msra.mxu0 0.0
  %1905 = vmatprep.subr.mxu0 0.0
  %1906 = vmatpush1.msra.mxu0 0.0
  %1907 = vmatprep.subr.mxu0 0.0
  %1908 = vmatpush1.msra.mxu0 0.0
  %1909 = vmatprep.subr.mxu0 0.0
  %1910 = vmatpush1.msra.mxu0 0.0
  %1911 = vmatprep.subr.mxu0 0.0
  %1912 = vmatpush1.msra.mxu0 0.0
  %1913 = vmatprep.subr.mxu0 0.0
  %1914 = vmatpush1.msra.mxu0 0.0
  %1915 = vmatprep.subr.mxu0 0.0
  %1916 = vmatpush1.msra.mxu0 0.0
  %1917 = vmatprep.subr.mxu0 0.0
  %1918 = vmatpush1.msra.mxu0 0.0
  %1919 = vmatprep.subr.mxu0 0.0
  %1920 = vmatpush1.msra.mxu0 0.0
  %1921 = vmatprep.subr.mxu0 0.0
  %1922 = vmatpush1.msra.mxu0 0.0
  %1923 = vmatprep.subr.mxu0 0.0
  %1924 = vmatpush1.msra.mxu0 0.0
  %1925 = vmatprep.subr.mxu0 0.0
  %1926 = vmatpush1.msra.mxu0 0.0
  %1927 = vmatprep.subr.mxu0 0.0
  %1928 = vmatpush1.msra.mxu0 0.0
  %1929 = vmatprep.mubr.f32.mxu0 0.0
  %1930 = vmatmul.mubr.f32.gmra.mrb[0].mxu0 %v1863
  %v1931 = vpop.f32.mrb[0].mxu0
  %v1932 = vadd.f32 0.0, %v1931
  %v1933 = vpop.f32.mrb[0].mxu0
  %1934 = vdwg.mxu0
  %v1935 = vadd.f32 %v1162, %v1932
  %v1936 = vxor.u32 %v1935, 2147483648
  %v1937 = vmul.f32 %v1936, 1.442695
  %v1938 = vpow.pop %v1937
  %v1939 = vadd.f32 %v1938, 1.0
  %v1940 = vrcp.pop %v1939
  %v1941 = vmul.f32 1.0, %v1940
  %v1942 = vtanh.pop %v1935
  %v1943 = vmul.f32 %v1941, %v1853
  %1945 = vrot.lane.b32.xlu0 %v1942, 32
  %v1946 = vpop.permute.xlu0 %1945
  %v1948 = vmul.f32 %v1941, %v1946
  %1950 = vrot.lane.b32.xlu0 %v1948, 32
  %v1951 = vpop.permute.xlu0 %1950
  %v1953 = vadd.f32 %v1943, %v1951
  %v1954 = vtanh.pop %v1953
  %1956 = vrot.lane.b32.xlu0 %v1954, 32
  %v1957 = vpop.permute.xlu0 %1956
  %v1959 = vmul.f32 %v1941, %v1957
  %v1960 = vld [vmem:[%s7] sm:$0xff]
  %v1961 = vld [vmem:[%s7 + $0x8] sm:$0xff]
  %v1962 = vld [vmem:[%s7 + $0x10] sm:$0xff]
  %v1963 = vld [vmem:[%s7 + $0x18] sm:$0xff]
  %v1964 = vld [vmem:[#allocation3] sm:$0x1]
  %v1966 = vlaneseq
  %v1967 = vshrl.u32 %v1966, 7
  %v1968 = vsub.s32 0, %v1967
  %v1969 = vrot.slane %v1964, %v1968
  %1972 = vrot.lane.b32.xlu0 %v1959, 64
  %v1973 = vpop.permute.xlu0 %1972
  %v1974 = vsel %vm188, %v1973, 0
  %1976 = vmatprep.subr.mxu0 0.0
  %1977 = vmatpush1.msra.mxu0 %v1960
  %1978 = vmatprep.subr.mxu0 0.0
  %1979 = vmatpush1.msra.mxu0 %v1961
  %1980 = vmatprep.subr.mxu0 0.0
  %1981 = vmatpush1.msra.mxu0 %v1962
  %1982 = vmatprep.subr.mxu0 0.0
  %1983 = vmatpush1.msra.mxu0 %v1963
  %1984 = vmatprep.subr.mxu0 0.0
  %1985 = vmatpush1.msra.mxu0 0.0
  %1986 = vmatprep.subr.mxu0 0.0
  %1987 = vmatpush1.msra.mxu0 0.0
  %1988 = vmatprep.subr.mxu0 0.0
  %1989 = vmatpush1.msra.mxu0 0.0
  %1990 = vmatprep.subr.mxu0 0.0
  %1991 = vmatpush1.msra.mxu0 0.0
  %1992 = vmatprep.subr.mxu0 0.0
  %1993 = vmatpush1.msra.mxu0 0.0
  %1994 = vmatprep.subr.mxu0 0.0
  %1995 = vmatpush1.msra.mxu0 0.0
  %1996 = vmatprep.subr.mxu0 0.0
  %1997 = vmatpush1.msra.mxu0 0.0
  %1998 = vmatprep.subr.mxu0 0.0
  %1999 = vmatpush1.msra.mxu0 0.0
  %2000 = vmatprep.subr.mxu0 0.0
  %2001 = vmatpush1.msra.mxu0 0.0
  %2002 = vmatprep.subr.mxu0 0.0
  %2003 = vmatpush1.msra.mxu0 0.0
  %2004 = vmatprep.subr.mxu0 0.0
  %2005 = vmatpush1.msra.mxu0 0.0
  %2006 = vmatprep.subr.mxu0 0.0
  %2007 = vmatpush1.msra.mxu0 0.0
  %2008 = vmatprep.subr.mxu0 0.0
  %2009 = vmatpush1.msra.mxu0 0.0
  %2010 = vmatprep.subr.mxu0 0.0
  %2011 = vmatpush1.msra.mxu0 0.0
  %2012 = vmatprep.subr.mxu0 0.0
  %2013 = vmatpush1.msra.mxu0 0.0
  %2014 = vmatprep.subr.mxu0 0.0
  %2015 = vmatpush1.msra.mxu0 0.0
  %2016 = vmatprep.subr.mxu0 0.0
  %2017 = vmatpush1.msra.mxu0 0.0
  %2018 = vmatprep.subr.mxu0 0.0
  %2019 = vmatpush1.msra.mxu0 0.0
  %2020 = vmatprep.subr.mxu0 0.0
  %2021 = vmatpush1.msra.mxu0 0.0
  %2022 = vmatprep.subr.mxu0 0.0
  %2023 = vmatpush1.msra.mxu0 0.0
  %2024 = vmatprep.subr.mxu0 0.0
  %2025 = vmatpush1.msra.mxu0 0.0
  %2026 = vmatprep.subr.mxu0 0.0
  %2027 = vmatpush1.msra.mxu0 0.0
  %2028 = vmatprep.subr.mxu0 0.0
  %2029 = vmatpush1.msra.mxu0 0.0
  %2030 = vmatprep.subr.mxu0 0.0
  %2031 = vmatpush1.msra.mxu0 0.0
  %2032 = vmatprep.subr.mxu0 0.0
  %2033 = vmatpush1.msra.mxu0 0.0
  %2034 = vmatprep.subr.mxu0 0.0
  %2035 = vmatpush1.msra.mxu0 0.0
  %2036 = vmatprep.subr.mxu0 0.0
  %2037 = vmatpush1.msra.mxu0 0.0
  %2038 = vmatprep.subr.mxu0 0.0
  %2039 = vmatpush1.msra.mxu0 0.0
  %2040 = vmatprep.mubr.f32.mxu0 0.0
  %2041 = vmatmul.mubr.f32.gmra.mrb[0].mxu0 %v1974
  %v2042 = vpop.f32.mrb[0].mxu0
  %v2043 = vadd.f32 %v1969, %v2042
  %v2044 = vpop.f32.mrb[0].mxu0
  %2045 = vdwg.mxu0
  %vm2046 = vcmask 7168
  %2047 = vst.msk [vmem:[%s9] sm:$0xff] %vm2046, %v2043
  // Predicated region
  $region38: #{tpu_custom_call.1} parent=0 // pred_check
    _
  $region39: #{tpu_custom_call.1} parent=0 // pred_check_branch
    %2049 = sbr.rel (0) target = $region41
  $region40: #{tpu_custom_call.1} parent=0 // pred_region
    _
  $region41: #{tpu_custom_call.1} parent=0 // pred_fallthru
    _
  // Predicated region
  $region42: #{tpu_custom_call.1} parent=0 // pred_check
    _
  $region43: #{tpu_custom_call.1} parent=0 // pred_check_branch
    %2051 = sbr.rel (0) target = $region45
  $region44: #{tpu_custom_call.1} parent=0 // pred_region
    _
  $region45: #{tpu_custom_call.1} parent=0 // pred_fallthru
    _

</llo_original>
